<compile_context>
chip_gen: v5e
topology: v5e:2x2
jax: 0.10.0
libtpu: 0.0.40
codegen_flags: <defaults>
</compile_context>

<pallas_src>
import math

import jax
import jax.numpy as jnp
from jax import lax
from jax.experimental import pallas as pl
from jax.experimental.pallas import tpu as pltpu


# ----------------------------------------------------------------------------
# Config (small demo sizes consistent with the module's shape algebra)
# ----------------------------------------------------------------------------
class Cfg:
    node_size = 8            # N
    time_series_size = 64    # T
    num_classes = 3
    num_kernels = 4          # V (views / frequency kernels)
    D = 5 - 1                # = 4 spatial components per view (C % heads == 0)
    p1 = 4
    p2 = 8
    num_heads = 4
    k = 5                    # local attention radius
    window_size = 16         # DCA dynamic-connectivity window
    fusion = "flatten"
    fs_fusion_type = "add"

    @property
    def C(self):             # output_time_feature_size = num_kernels * D
        return self.num_kernels * self.D

    @property
    def T1(self):
        return self.time_series_size // self.p1

    @property
    def T2(self):            # output_time_series_size
        return self.time_series_size // self.p1 // self.p2

    @property
    def d_model(self):       # fusion == 'flatten'
        return self.C * self.T2


# ----------------------------------------------------------------------------
# Structural-matrix helpers (plain JAX, built once at init time)
# ----------------------------------------------------------------------------
def toeplitz_conv_matrix(w, T):
    """Matrix M so that (x @ M)[n, t] = sum_j x[n, t + j - pad] * w[j]
    ('same'-padded cross-correlation, matching PyTorch Conv semantics)."""
    ks = w.shape[0]
    pad = ks // 2
    t_in = jnp.arange(T)[:, None]
    t_out = jnp.arange(T)[None, :]
    j = t_in - t_out + pad
    valid = (j >= 0) & (j < ks)
    jj = jnp.clip(j, 0, ks - 1)
    return jnp.where(valid, w[jj], 0.0).astype(jnp.float32)


def pool_matrix(T, p):
    # TODO(synk): modelled as average pooling; if the original module uses
    # MaxPool1d for p1/p2 this pooling-as-matmul is an approximation.
    Tp = T // p
    m = (jnp.arange(T)[:, None] // p) == jnp.arange(Tp)[None, :]
    return m.astype(jnp.float32) / float(p)


def init_params(cfg, key):
    """Raw module parameters folded into batch-independent kernel operands."""
    N, T = cfg.node_size, cfg.time_series_size
    V, D, C = cfg.num_kernels, cfg.D, cfg.C
    T1, T2, K = cfg.T1, cfg.T2, cfg.num_classes
    WT = cfg.window_size
    NW = T // WT
    eps = 1e-5
    ks_list = [3, 5, 7, 9][:V]
    keys = jax.random.split(key, 16)
    bf16 = jnp.bfloat16

    # ---- raw parameters (as in the PyTorch module) ----
    tconv = jnp.stack(
        [toeplitz_conv_matrix(
            jax.random.normal(keys[v], (ks,), jnp.float32) / math.sqrt(ks), T)
         for v, ks in enumerate(ks_list)], axis=0)                     # (V, T, T)
    ws = jax.random.normal(keys[4], (V, D, N), jnp.float32) / math.sqrt(N)
    wd = jax.random.normal(keys[5], (V, D, N), jnp.float32) / math.sqrt(N)
    gamma, beta = jnp.ones(C, jnp.float32), jnp.zeros(C, jnp.float32)
    rmean, rvar = jnp.zeros(C, jnp.float32), jnp.ones(C, jnp.float32)
    wq, wk, wv, wo = [jax.random.normal(kk, (C, C), jnp.float32) / math.sqrt(C)
                      for kk in keys[6:10]]
    fc_w = jax.random.normal(keys[10], (cfg.d_model, K), jnp.float32) \
        / math.sqrt(cfg.d_model)
    fc_b = jnp.zeros((1, K), jnp.float32)

    # ---- kernel operands (batch-independent; bf16 for MXU weight matrices) ----
    p = {}
    p["tconv"] = tconv.astype(bf16)                                    # (V, T, T)
    p["ws"] = ws.reshape(C, N).astype(bf16)                            # (C, N)
    p["wd"] = wd.reshape(C, N).astype(bf16)                            # (C, N)
    bn_scale = gamma * lax.rsqrt(rvar + eps)
    p["bn_scale"] = bn_scale.reshape(C, 1).astype(jnp.float32)
    p["bn_shift"] = (beta - rmean * bn_scale).reshape(C, 1).astype(jnp.float32)
    p["pool1"] = pool_matrix(T, cfg.p1).astype(bf16)                   # (T, T1)
    p["pool2"] = pool_matrix(T1, cfg.p2).astype(bf16)                  # (T1, T2)
    p["wqkvT"] = jnp.concatenate([wq.T, wk.T, wv.T], axis=0).astype(bf16)  # (3C, C)
    p["woT"] = wo.T.astype(bf16)                                       # (C, C)
    # DCA block-diagonal (per-window) additive mask over the (NW*N) row axis.
    r = jnp.arange(NW * N)
    p["dca_mask"] = jnp.where((r[:, None] // N) == (r[None, :] // N),
                              0.0, -1e9).astype(jnp.float32)           # (NW*N, NW*N)
    # LTSA local sliding-window additive mask (per batch -> just (T1, T1)).
    t = jnp.arange(T1)
    p["lmask"] = jnp.where(jnp.abs(t[:, None] - t[None, :]) <= cfg.k,
                           0.0, -1e9).astype(jnp.float32)              # (T1, T1)
    # Classification head weights re-indexed for the (C, T2) hidden layout.
    p["wT"] = fc_w.reshape(C, T2, K).transpose(1, 0, 2).astype(jnp.float32)  # (T2, C, K)
    p["fc_b"] = fc_b                                                   # (1, K)
    return p


# ----------------------------------------------------------------------------
# Fused forward: one pallas_call, grid over batch (parallel)
# ----------------------------------------------------------------------------
def dfast_forward(time_series, params, cfg):
    B, N, T = time_series.shape
    V, D, C = cfg.num_kernels, cfg.D, cfg.C
    WT = cfg.window_size
    NW = T // WT
    G = NW * N
    T1, T2 = cfg.T1, cfg.T2
    H = cfg.num_heads
    HD = C // H
    K = cfg.num_classes
    scale = 1.0 / math.sqrt(HD)
    f32 = jnp.float32
    bf16 = jnp.bfloat16

    # Per-batch windowed layout for DCA: (B, NW*N, WT).  Tiny host-side relayout.
    xwf = (time_series.reshape(B, N, NW, WT)
           .transpose(0, 2, 1, 3).reshape(B, G, WT))

    def kernel(x_ref, xwf_ref, tconv_ref, ws_ref, wd_ref, dcam_ref,
               bnsc_ref, bnsh_ref, p1_ref, wqkv_ref, lmask_ref, wo_ref,
               p2_ref, wT_ref, fcb_ref,
               probs_ref, hid_ref):
        x = x_ref[...]                                                   # (N, T) f32

        # ---------------- MultiViewAttention ----------------
        # Spatial projection for all V views, then all V temporal convs as ONE
        # batched matmul against the resident (V, T, T) Toeplitz bank.
        s = jnp.dot(ws_ref[...], x.astype(bf16),
                    preferred_element_type=f32)                          # (C, T)
        h1 = jnp.einsum("vds,vst->vdt", s.reshape(V, D, T).astype(bf16),
                        tconv_ref[...],
                        preferred_element_type=f32).reshape(C, T)        # (C, T)
        # TODO(synk): original cross-view attention weighting unavailable;
        # views are stacked along the feature axis as in the published arch.

        # ------------- DynamicConnectogramAttention -------------
        # All NW windows attended jointly: one MXU-shaped Gram with a
        # block-diagonal additive mask replaces NW tiny batched matmuls.
        xf = xwf_ref[...]                                                # (G, WT) f32
        gram = lax.dot_general(xf, xf, (((1,), (1,)), ((), ())),
                               preferred_element_type=f32) * (1.0 / WT)
        gram = gram + dcam_ref[...]
        gram = gram - jnp.max(gram, axis=-1, keepdims=True)
        e = jnp.exp(gram)
        att = e * pl.reciprocal(jnp.sum(e, axis=-1, keepdims=True), approx=True)
        # TODO(synk): top-k (config.k) / sparsity thresholding of the
        # connectogram attention omitted (original impl unavailable).
        aw = jnp.dot(att, xf, preferred_element_type=f32)                # (G, WT)
        a_full = jnp.swapaxes(aw.reshape(NW, N, WT), 0, 1).reshape(N, T) # (N, T)
        h2 = jnp.dot(wd_ref[...], a_full.astype(bf16),
                     preferred_element_type=f32)                         # (C, T)

        # ---- fusion ('add') + Dropout(eval) + BatchNorm2d (eval, folded) ----
        h = (h1 + h2) * bnsc_ref[...] + bnsh_ref[...]                    # (C, T)

        # ------------- LocalTemporalSlidingAttention -------------
        hp = jnp.dot(h.astype(bf16), p1_ref[...],
                     preferred_element_type=f32)                         # (C, T1)
        qkv = jnp.dot(wqkv_ref[...], hp.astype(bf16),
                      preferred_element_type=f32)                        # (3C, T1)
        q = qkv[0:C].reshape(H, HD, T1)
        k = qkv[C:2 * C].reshape(H, HD, T1)
        v = qkv[2 * C:3 * C].reshape(H, HD, T1)
        sc = jnp.einsum("hdi,hdj->hij", q, k,
                        preferred_element_type=f32) * scale + lmask_ref[...]
        sc = sc - jnp.max(sc, axis=-1, keepdims=True)
        ee = jnp.exp(sc)
        pr = ee * pl.reciprocal(jnp.sum(ee, axis=-1, keepdims=True), approx=True)
        ctx = jnp.einsum("hdj,hij->hdi", v, pr,
                         preferred_element_type=f32)                     # (H, HD, T1)
        out = jnp.dot(wo_ref[...], ctx.reshape(C, T1).astype(bf16),
                      preferred_element_type=f32) + hp                   # residual
        # TODO(synk): exact LTSA internals (norms / FFN, if any) unavailable.
        hidden = jnp.dot(out.astype(bf16), p2_ref[...],
                         preferred_element_type=f32)                     # (C, T2)
        hid_ref[...] = hidden

        # ---------------- classification head (fused) ----------------
        # logits[k] = sum_{c,t} hidden[c,t] * fc_w[c*T2+t, k] + fc_b[k]
        logits = fcb_ref[...]                                            # (1, K)
        for t in range(T2):                       # T2 is tiny and static
            logits = logits + lax.dot_general(
                hidden[:, t:t + 1], wT_ref[t], (((0,), (0,)), ((), ())),
                preferred_element_type=f32)                              # (1, K)
        logits = logits - jnp.max(logits, axis=-1, keepdims=True)
        eh = jnp.exp(logits)
        # Exact (non-approx) normalization for the final class softmax.
        probs_ref[...] = eh / jnp.sum(eh, axis=-1, keepdims=True)

    # --- cost estimate (per-batch MACs x B) ---
    macs = (C * N * T + V * D * T * T + 2 * G * G * WT + C * N * T
            + C * T * T1 + 3 * C * C * T1 + 2 * H * T1 * T1 * HD
            + C * C * T1 + C * T1 * T2 + C * T2 * K)
    n_exp = G * G + H * T1 * T1 + K
    param_bytes = sum(math.prod(v.shape) * v.dtype.itemsize for v in params.values())
    cost = pl.CostEstimate(
        flops=2 * macs * B,
        transcendentals=n_exp * B,
        bytes_accessed=int(B * N * T * 4 + B * G * WT * 4 + param_bytes
                           + B * (K + C * T2) * 4))

    grid_spec = pltpu.PrefetchScalarGridSpec(
        num_scalar_prefetch=0,
        grid=(B,),
        in_specs=[
            # per-batch activation blocks
            pl.BlockSpec((None, N, T), lambda b: (b, 0, 0)),      # x
            pl.BlockSpec((None, G, WT), lambda b: (b, 0, 0)),     # xwf
            # batch-independent, VMEM-resident operands (constant index maps)
            pl.BlockSpec((V, T, T), lambda b: (0, 0, 0)),         # tconv bank
            pl.BlockSpec((C, N), lambda b: (0, 0)),               # ws
            pl.BlockSpec((C, N), lambda b: (0, 0)),               # wd
            pl.BlockSpec((G, G), lambda b: (0, 0)),               # dca_mask
            pl.BlockSpec((C, 1), lambda b: (0, 0)),               # bn_scale
            pl.BlockSpec((C, 1), lambda b: (0, 0)),               # bn_shift
            pl.BlockSpec((T, T1), lambda b: (0, 0)),              # pool1
            pl.BlockSpec((3 * C, C), lambda b: (0, 0)),           # wqkvT
            pl.BlockSpec((T1, T1), lambda b: (0, 0)),             # lmask
            pl.BlockSpec((C, C), lambda b: (0, 0)),               # woT
            pl.BlockSpec((T1, T2), lambda b: (0, 0)),             # pool2
            pl.BlockSpec((T2, C, K), lambda b: (0, 0, 0)),        # wT (head)
            pl.BlockSpec((1, K), lambda b: (0, 0)),               # fc_b
        ],
        out_specs=(
            pl.BlockSpec((None, 1, K), lambda b: (b, 0, 0)),      # probs
            # NOTE: T2 < 128 lanes -> masked store; acceptable at toy sizes.
            pl.BlockSpec((None, C, T2), lambda b: (b, 0, 0)),     # hidden
        ),
    )

    probs3, hidden = pl.pallas_call(
        kernel,
        grid_spec=grid_spec,
        out_shape=(jax.ShapeDtypeStruct((B, 1, K), jnp.float32),
                   jax.ShapeDtypeStruct((B, C, T2), jnp.float32)),
        compiler_params=pltpu.CompilerParams(
            dimension_semantics=("parallel",),      # v7x: split batch over 2 TCs
            vmem_limit_bytes=32 * 1024 * 1024),
        cost_estimate=cost,
    )(time_series, xwf, params["tconv"], params["ws"], params["wd"],
      params["dca_mask"], params["bn_scale"], params["bn_shift"],
      params["pool1"], params["wqkvT"], params["lmask"], params["woT"],
      params["pool2"], params["wT"], params["fc_b"])

    probs = probs3.reshape(B, K)
    features = hidden.reshape(B, C * T2)
    return {"logits": probs, "hidden_state": hidden, "brain_state": features}


if __name__ == "__main__":
    cfg = Cfg()
    key = jax.random.PRNGKey(0)
    k_param, k_data = jax.random.split(key)
    B = 2
    time_series = jax.random.normal(
        k_data, (B, cfg.node_size, cfg.time_series_size), jnp.float32)   # (B, N, T)
    params = init_params(cfg, k_param)

    fwd = jax.jit(lambda ts, ps: dfast_forward(ts, ps, cfg))
    out = fwd(time_series, params)
    jax.block_until_ready(out["logits"])
    jax.block_until_ready(out["hidden_state"])
    jax.block_until_ready(out["brain_state"])

    assert out["logits"].shape == (B, cfg.num_classes)
    assert out["hidden_state"].shape == (B, cfg.C, cfg.T2)
    assert out["brain_state"].shape == (B, cfg.d_model)
    print("KERNEL_OK")
</pallas_src>

<mosaic_0001>
module attributes {stable_mosaic.version = 11 : i64} {
  func.func @kernel(%arg0: i32, %arg1: memref<1x8x64xf32, #tpu.memory_space<vmem>>, %arg2: memref<1x32x16xf32, #tpu.memory_space<vmem>>, %arg3: memref<4x64x64xbf16, #tpu.memory_space<vmem>>, %arg4: memref<16x8xbf16, #tpu.memory_space<vmem>>, %arg5: memref<16x8xbf16, #tpu.memory_space<vmem>>, %arg6: memref<32x32xf32, #tpu.memory_space<vmem>>, %arg7: memref<16x1xf32, #tpu.memory_space<vmem>>, %arg8: memref<16x1xf32, #tpu.memory_space<vmem>>, %arg9: memref<64x16xbf16, #tpu.memory_space<vmem>>, %arg10: memref<48x16xbf16, #tpu.memory_space<vmem>>, %arg11: memref<16x16xf32, #tpu.memory_space<vmem>>, %arg12: memref<16x16xbf16, #tpu.memory_space<vmem>>, %arg13: memref<16x2xbf16, #tpu.memory_space<vmem>>, %arg14: memref<2x16x3xf32, #tpu.memory_space<vmem>>, %arg15: memref<1x3xf32, #tpu.memory_space<vmem>>, %arg16: memref<1x1x3xf32, #tpu.memory_space<vmem>>, %arg17: memref<1x16x2xf32, #tpu.memory_space<vmem>>) attributes {dimension_semantics = [#tpu.dimension_semantics<parallel>], iteration_bounds = array<i64: 2>, scalar_prefetch = 0 : i64, scratch_operands = 0 : i64, tpu.core_type = #tpu.core_type<tc>, window_params = [{transform_indices = @transform_0, window_bounds = array<i64: 1, 8, 64>}, {transform_indices = @transform_1, window_bounds = array<i64: 1, 32, 16>}, {pipeline_mode = #tpu.pipeline_mode<synchronous>, transform_indices = @transform_2, window_bounds = array<i64: 4, 64, 64>}, {pipeline_mode = #tpu.pipeline_mode<synchronous>, transform_indices = @transform_3, window_bounds = array<i64: 16, 8>}, {pipeline_mode = #tpu.pipeline_mode<synchronous>, transform_indices = @transform_4, window_bounds = array<i64: 16, 8>}, {pipeline_mode = #tpu.pipeline_mode<synchronous>, transform_indices = @transform_5, window_bounds = array<i64: 32, 32>}, {pipeline_mode = #tpu.pipeline_mode<synchronous>, transform_indices = @transform_6, window_bounds = array<i64: 16, 1>}, {pipeline_mode = #tpu.pipeline_mode<synchronous>, transform_indices = @transform_7, window_bounds = array<i64: 16, 1>}, {pipeline_mode = #tpu.pipeline_mode<synchronous>, transform_indices = @transform_8, window_bounds = array<i64: 64, 16>}, {pipeline_mode = #tpu.pipeline_mode<synchronous>, transform_indices = @transform_9, window_bounds = array<i64: 48, 16>}, {pipeline_mode = #tpu.pipeline_mode<synchronous>, transform_indices = @transform_10, window_bounds = array<i64: 16, 16>}, {pipeline_mode = #tpu.pipeline_mode<synchronous>, transform_indices = @transform_11, window_bounds = array<i64: 16, 16>}, {pipeline_mode = #tpu.pipeline_mode<synchronous>, transform_indices = @transform_12, window_bounds = array<i64: 16, 2>}, {pipeline_mode = #tpu.pipeline_mode<synchronous>, transform_indices = @transform_13, window_bounds = array<i64: 2, 16, 3>}, {pipeline_mode = #tpu.pipeline_mode<synchronous>, transform_indices = @transform_14, window_bounds = array<i64: 1, 3>}, {transform_indices = @transform_15, window_bounds = array<i64: 1, 1, 3>}, {transform_indices = @transform_16, window_bounds = array<i64: 1, 16, 2>}]} {
    %c0 = arith.constant 0 : index
    %c0_0 = arith.constant 0 : index
    %c0_1 = arith.constant 0 : index
    %0 = vector.load %arg1[%c0, %c0_0, %c0_1] : memref<1x8x64xf32, #tpu.memory_space<vmem>>, vector<1x8x64xf32>
    %1 = vector.shape_cast %0 : vector<1x8x64xf32> to vector<8x64xf32>
    %c0_2 = arith.constant 0 : index
    %c0_3 = arith.constant 0 : index
    %2 = vector.load %arg4[%c0_2, %c0_3] : memref<16x8xbf16, #tpu.memory_space<vmem>>, vector<16x8xbf16>
    %3 = arith.truncf %1 : vector<8x64xf32> to vector<8x64xbf16>
    %cst = arith.constant dense<0.000000e+00> : vector<16x64xf32>
    %4 = tpu.matmul %2, %3, %cst {dimension_numbers = #tpu.dot_dimension_numbers<[1], [0], [0], [1], [0, 0, 1, 1], [], []>} : vector<16x8xbf16>, vector<8x64xbf16>, vector<16x64xf32> -> vector<16x64xf32>
    %5 = vector.shape_cast %4 : vector<16x64xf32> to vector<4x4x64xf32>
    %6 = arith.truncf %5 : vector<4x4x64xf32> to vector<4x4x64xbf16>
    %c0_4 = arith.constant 0 : index
    %c0_5 = arith.constant 0 : index
    %c0_6 = arith.constant 0 : index
    %7 = vector.load %arg3[%c0_4, %c0_5, %c0_6] : memref<4x64x64xbf16, #tpu.memory_space<vmem>>, vector<4x64x64xbf16>
    "tpu.trace_start"() <{level = 10 : i32, message = "vds,vst->vdt"}> : () -> ()
    %cst_7 = arith.constant dense<0.000000e+00> : vector<4x4x64xf32>
    %8 = tpu.matmul %6, %7, %cst_7 {dimension_numbers = #tpu.dot_dimension_numbers<[2], [1], [1], [2], [0, 0, 0, 1, 1, 2], [0], [0]>} : vector<4x4x64xbf16>, vector<4x64x64xbf16>, vector<4x4x64xf32> -> vector<4x4x64xf32>
    "tpu.trace_stop"() : () -> ()
    %9 = vector.shape_cast %8 : vector<4x4x64xf32> to vector<16x64xf32>
    %c0_8 = arith.constant 0 : index
    %c0_9 = arith.constant 0 : index
    %c0_10 = arith.constant 0 : index
    %10 = vector.load %arg2[%c0_8, %c0_9, %c0_10] : memref<1x32x16xf32, #tpu.memory_space<vmem>>, vector<1x32x16xf32>
    %11 = vector.shape_cast %10 : vector<1x32x16xf32> to vector<32x16xf32>
    %cst_11 = arith.constant dense<0.000000e+00> : vector<32x32xf32>
    %12 = tpu.matmul %11, %11, %cst_11 {dimension_numbers = #tpu.dot_dimension_numbers<[1], [1], [0], [0], [0, 0, 1, 0], [], []>} : vector<32x16xf32>, vector<32x16xf32>, vector<32x32xf32> -> vector<32x32xf32>
    %cst_12 = arith.constant 6.250000e-02 : f32
    %13 = vector.broadcast %cst_12 : f32 to vector<32x32xf32>
    %14 = arith.mulf %12, %13 : vector<32x32xf32>
    %c0_13 = arith.constant 0 : index
    %c0_14 = arith.constant 0 : index
    %15 = vector.load %arg6[%c0_13, %c0_14] : memref<32x32xf32, #tpu.memory_space<vmem>>, vector<32x32xf32>
    %16 = arith.addf %14, %15 : vector<32x32xf32>
    %cst_15 = arith.constant dense<0xFF800000> : vector<32xf32>
    %17 = vector.multi_reduction <maximumf>, %16, %cst_15 [1] : vector<32x32xf32> to vector<32xf32>
    %18 = vector.shape_cast %17 : vector<32xf32> to vector<32x1xf32>
    %19 = vector.broadcast %18 : vector<32x1xf32> to vector<32x32xf32>
    %20 = arith.subf %16, %19 : vector<32x32xf32>
    %21 = math.exp %20 : vector<32x32xf32>
    %cst_16 = arith.constant dense<0.000000e+00> : vector<32xf32>
    %22 = vector.multi_reduction <add>, %21, %cst_16 [1] : vector<32x32xf32> to vector<32xf32>
    %23 = vector.shape_cast %22 : vector<32xf32> to vector<32x1xf32>
    %24 = tpu.reciprocal %23 {approx = true} : vector<32x1xf32> -> vector<32x1xf32>
    %25 = vector.broadcast %24 : vector<32x1xf32> to vector<32x32xf32>
    %26 = arith.mulf %21, %25 : vector<32x32xf32>
    %cst_17 = arith.constant dense<0.000000e+00> : vector<32x16xf32>
    %27 = tpu.matmul %26, %11, %cst_17 {dimension_numbers = #tpu.dot_dimension_numbers<[1], [0], [0], [1], [0, 0, 1, 1], [], []>} : vector<32x32xf32>, vector<32x16xf32>, vector<32x16xf32> -> vector<32x16xf32>
    %28 = vector.shape_cast %27 : vector<32x16xf32> to vector<4x8x16xf32>
    %29 = tpu.transpose %28, [1, 0, 2] : vector<4x8x16xf32> -> vector<8x4x16xf32>
    %30 = vector.shape_cast %29 : vector<8x4x16xf32> to vector<8x64xf32>
    %c0_18 = arith.constant 0 : index
    %c0_19 = arith.constant 0 : index
    %31 = vector.load %arg5[%c0_18, %c0_19] : memref<16x8xbf16, #tpu.memory_space<vmem>>, vector<16x8xbf16>
    %32 = arith.truncf %30 : vector<8x64xf32> to vector<8x64xbf16>
    %cst_20 = arith.constant dense<0.000000e+00> : vector<16x64xf32>
    %33 = tpu.matmul %31, %32, %cst_20 {dimension_numbers = #tpu.dot_dimension_numbers<[1], [0], [0], [1], [0, 0, 1, 1], [], []>} : vector<16x8xbf16>, vector<8x64xbf16>, vector<16x64xf32> -> vector<16x64xf32>
    %34 = arith.addf %9, %33 : vector<16x64xf32>
    %c0_21 = arith.constant 0 : index
    %c0_22 = arith.constant 0 : index
    %35 = vector.load %arg7[%c0_21, %c0_22] : memref<16x1xf32, #tpu.memory_space<vmem>>, vector<16x1xf32>
    %36 = vector.broadcast %35 : vector<16x1xf32> to vector<16x64xf32>
    %37 = arith.mulf %34, %36 : vector<16x64xf32>
    %c0_23 = arith.constant 0 : index
    %c0_24 = arith.constant 0 : index
    %38 = vector.load %arg8[%c0_23, %c0_24] : memref<16x1xf32, #tpu.memory_space<vmem>>, vector<16x1xf32>
    %39 = vector.broadcast %38 : vector<16x1xf32> to vector<16x64xf32>
    %40 = arith.addf %37, %39 : vector<16x64xf32>
    %41 = arith.truncf %40 : vector<16x64xf32> to vector<16x64xbf16>
    %c0_25 = arith.constant 0 : index
    %c0_26 = arith.constant 0 : index
    %42 = vector.load %arg9[%c0_25, %c0_26] : memref<64x16xbf16, #tpu.memory_space<vmem>>, vector<64x16xbf16>
    %cst_27 = arith.constant dense<0.000000e+00> : vector<16x16xf32>
    %43 = tpu.matmul %41, %42, %cst_27 {dimension_numbers = #tpu.dot_dimension_numbers<[1], [0], [0], [1], [0, 0, 1, 1], [], []>} : vector<16x64xbf16>, vector<64x16xbf16>, vector<16x16xf32> -> vector<16x16xf32>
    %c0_28 = arith.constant 0 : index
    %c0_29 = arith.constant 0 : index
    %44 = vector.load %arg10[%c0_28, %c0_29] : memref<48x16xbf16, #tpu.memory_space<vmem>>, vector<48x16xbf16>
    %45 = arith.truncf %43 : vector<16x16xf32> to vector<16x16xbf16>
    %cst_30 = arith.constant dense<0.000000e+00> : vector<48x16xf32>
    %46 = tpu.matmul %44, %45, %cst_30 {dimension_numbers = #tpu.dot_dimension_numbers<[1], [0], [0], [1], [0, 0, 1, 1], [], []>} : vector<48x16xbf16>, vector<16x16xbf16>, vector<48x16xf32> -> vector<48x16xf32>
    %47 = vector.extract_strided_slice %46 {offsets = [0, 0], sizes = [16, 16], strides = [1, 1]} : vector<48x16xf32> to vector<16x16xf32>
    %48 = vector.shape_cast %47 : vector<16x16xf32> to vector<4x4x16xf32>
    %49 = vector.extract_strided_slice %46 {offsets = [16, 0], sizes = [16, 16], strides = [1, 1]} : vector<48x16xf32> to vector<16x16xf32>
    %50 = vector.shape_cast %49 : vector<16x16xf32> to vector<4x4x16xf32>
    %51 = vector.extract_strided_slice %46 {offsets = [32, 0], sizes = [16, 16], strides = [1, 1]} : vector<48x16xf32> to vector<16x16xf32>
    %52 = vector.shape_cast %51 : vector<16x16xf32> to vector<4x4x16xf32>
    "tpu.trace_start"() <{level = 10 : i32, message = "hdi,hdj->hij"}> : () -> ()
    %cst_31 = arith.constant dense<0.000000e+00> : vector<4x16x16xf32>
    %53 = tpu.matmul %48, %50, %cst_31 {dimension_numbers = #tpu.dot_dimension_numbers<[1], [1], [2], [2], [0, 0, 0, 2, 1, 2], [0], [0]>} : vector<4x4x16xf32>, vector<4x4x16xf32>, vector<4x16x16xf32> -> vector<4x16x16xf32>
    "tpu.trace_stop"() : () -> ()
    %cst_32 = arith.constant 5.000000e-01 : f32
    %54 = vector.broadcast %cst_32 : f32 to vector<4x16x16xf32>
    %55 = arith.mulf %53, %54 : vector<4x16x16xf32>
    %c0_33 = arith.constant 0 : index
    %c0_34 = arith.constant 0 : index
    %56 = vector.load %arg11[%c0_33, %c0_34] : memref<16x16xf32, #tpu.memory_space<vmem>>, vector<16x16xf32>
    %57 = vector.shape_cast %56 : vector<16x16xf32> to vector<1x16x16xf32>
    %58 = vector.broadcast %57 : vector<1x16x16xf32> to vector<4x16x16xf32>
    %59 = arith.addf %55, %58 : vector<4x16x16xf32>
    %cst_35 = arith.constant dense<0xFF800000> : vector<4x16xf32>
    %60 = vector.multi_reduction <maximumf>, %59, %cst_35 [2] : vector<4x16x16xf32> to vector<4x16xf32>
    %61 = vector.shape_cast %60 : vector<4x16xf32> to vector<4x16x1xf32>
    %62 = vector.broadcast %61 : vector<4x16x1xf32> to vector<4x16x16xf32>
    %63 = arith.subf %59, %62 : vector<4x16x16xf32>
    %64 = math.exp %63 : vector<4x16x16xf32>
    %cst_36 = arith.constant dense<0.000000e+00> : vector<4x16xf32>
    %65 = vector.multi_reduction <add>, %64, %cst_36 [2] : vector<4x16x16xf32> to vector<4x16xf32>
    %66 = vector.shape_cast %65 : vector<4x16xf32> to vector<4x16x1xf32>
    %67 = tpu.reciprocal %66 {approx = true} : vector<4x16x1xf32> -> vector<4x16x1xf32>
    %68 = vector.broadcast %67 : vector<4x16x1xf32> to vector<4x16x16xf32>
    %69 = arith.mulf %64, %68 : vector<4x16x16xf32>
    "tpu.trace_start"() <{level = 10 : i32, message = "hdj,hij->hdi"}> : () -> ()
    %cst_37 = arith.constant dense<0.000000e+00> : vector<4x4x16xf32>
    %70 = tpu.matmul %52, %69, %cst_37 {dimension_numbers = #tpu.dot_dimension_numbers<[2], [2], [1], [1], [0, 0, 0, 1, 1, 1], [0], [0]>} : vector<4x4x16xf32>, vector<4x16x16xf32>, vector<4x4x16xf32> -> vector<4x4x16xf32>
    "tpu.trace_stop"() : () -> ()
    %c0_38 = arith.constant 0 : index
    %c0_39 = arith.constant 0 : index
    %71 = vector.load %arg12[%c0_38, %c0_39] : memref<16x16xbf16, #tpu.memory_space<vmem>>, vector<16x16xbf16>
    %72 = vector.shape_cast %70 : vector<4x4x16xf32> to vector<16x16xf32>
    %73 = arith.truncf %72 : vector<16x16xf32> to vector<16x16xbf16>
    %cst_40 = arith.constant dense<0.000000e+00> : vector<16x16xf32>
    %74 = tpu.matmul %71, %73, %cst_40 {dimension_numbers = #tpu.dot_dimension_numbers<[1], [0], [0], [1], [0, 0, 1, 1], [], []>} : vector<16x16xbf16>, vector<16x16xbf16>, vector<16x16xf32> -> vector<16x16xf32>
    %75 = arith.addf %74, %43 : vector<16x16xf32>
    %76 = arith.truncf %75 : vector<16x16xf32> to vector<16x16xbf16>
    %c0_41 = arith.constant 0 : index
    %c0_42 = arith.constant 0 : index
    %77 = vector.load %arg13[%c0_41, %c0_42] : memref<16x2xbf16, #tpu.memory_space<vmem>>, vector<16x2xbf16>
    %cst_43 = arith.constant dense<0.000000e+00> : vector<16x2xf32>
    %78 = tpu.matmul %76, %77, %cst_43 {dimension_numbers = #tpu.dot_dimension_numbers<[1], [0], [0], [1], [0, 0, 1, 1], [], []>} : vector<16x16xbf16>, vector<16x2xbf16>, vector<16x2xf32> -> vector<16x2xf32>
    %c0_44 = arith.constant 0 : index
    %c0_45 = arith.constant 0 : index
    %c0_46 = arith.constant 0 : index
    %79 = vector.load %arg17[%c0_44, %c0_45, %c0_46] : memref<1x16x2xf32, #tpu.memory_space<vmem>>, vector<1x16x2xf32>
    %80 = vector.shape_cast %79 : vector<1x16x2xf32> to vector<16x2xf32>
    %81 = vector.shape_cast %78 : vector<16x2xf32> to vector<1x16x2xf32>
    tpu.vector_store %arg17[%c0_44, %c0_45, %c0_46], %81 {strides = array<i32>} : memref<1x16x2xf32, #tpu.memory_space<vmem>>, vector<1x16x2xf32>,
    %c0_47 = arith.constant 0 : index
    %c0_48 = arith.constant 0 : index
    %82 = vector.load %arg15[%c0_47, %c0_48] : memref<1x3xf32, #tpu.memory_space<vmem>>, vector<1x3xf32>
    %83 = vector.extract_strided_slice %78 {offsets = [0, 0], sizes = [16, 1], strides = [1, 1]} : vector<16x2xf32> to vector<16x1xf32>
    %c0_49 = arith.constant 0 : index
    %c0_50 = arith.constant 0 : index
    %c0_51 = arith.constant 0 : index
    %84 = vector.load %arg14[%c0_49, %c0_50, %c0_51] : memref<2x16x3xf32, #tpu.memory_space<vmem>>, vector<1x16x3xf32>
    %85 = vector.shape_cast %84 : vector<1x16x3xf32> to vector<16x3xf32>
    %cst_52 = arith.constant dense<0.000000e+00> : vector<1x3xf32>
    %86 = tpu.matmul %83, %85, %cst_52 {dimension_numbers = #tpu.dot_dimension_numbers<[0], [0], [1], [1], [0, 1, 1, 1], [], []>} : vector<16x1xf32>, vector<16x3xf32>, vector<1x3xf32> -> vector<1x3xf32>
    %87 = arith.addf %82, %86 : vector<1x3xf32>
    %88 = vector.extract_strided_slice %78 {offsets = [0, 1], sizes = [16, 1], strides = [1, 1]} : vector<16x2xf32> to vector<16x1xf32>
    %c1 = arith.constant 1 : index
    %c0_53 = arith.constant 0 : index
    %c0_54 = arith.constant 0 : index
    %89 = vector.load %arg14[%c1, %c0_53, %c0_54] : memref<2x16x3xf32, #tpu.memory_space<vmem>>, vector<1x16x3xf32>
    %90 = vector.shape_cast %89 : vector<1x16x3xf32> to vector<16x3xf32>
    %cst_55 = arith.constant dense<0.000000e+00> : vector<1x3xf32>
    %91 = tpu.matmul %88, %90, %cst_55 {dimension_numbers = #tpu.dot_dimension_numbers<[0], [0], [1], [1], [0, 1, 1, 1], [], []>} : vector<16x1xf32>, vector<16x3xf32>, vector<1x3xf32> -> vector<1x3xf32>
    %92 = arith.addf %87, %91 : vector<1x3xf32>
    %cst_56 = arith.constant dense<0xFF800000> : vector<1xf32>
    %93 = vector.multi_reduction <maximumf>, %92, %cst_56 [1] : vector<1x3xf32> to vector<1xf32>
    %94 = vector.shape_cast %93 : vector<1xf32> to vector<1x1xf32>
    %95 = vector.broadcast %94 : vector<1x1xf32> to vector<1x3xf32>
    %96 = arith.subf %92, %95 : vector<1x3xf32>
    %97 = math.exp %96 : vector<1x3xf32>
    %cst_57 = arith.constant dense<0.000000e+00> : vector<1xf32>
    %98 = vector.multi_reduction <add>, %97, %cst_57 [1] : vector<1x3xf32> to vector<1xf32>
    %99 = vector.shape_cast %98 : vector<1xf32> to vector<1x1xf32>
    %100 = vector.broadcast %99 : vector<1x1xf32> to vector<1x3xf32>
    %101 = arith.divf %97, %100 : vector<1x3xf32>
    %c0_58 = arith.constant 0 : index
    %c0_59 = arith.constant 0 : index
    %c0_60 = arith.constant 0 : index
    %102 = vector.load %arg16[%c0_58, %c0_59, %c0_60] : memref<1x1x3xf32, #tpu.memory_space<vmem>>, vector<1x1x3xf32>
    %103 = vector.shape_cast %102 : vector<1x1x3xf32> to vector<1x3xf32>
    %104 = vector.shape_cast %101 : vector<1x3xf32> to vector<1x1x3xf32>
    tpu.vector_store %arg16[%c0_58, %c0_59, %c0_60], %104 {strides = array<i32>} : memref<1x1x3xf32, #tpu.memory_space<vmem>>, vector<1x1x3xf32>,
    return
  }
  func.func @transform_0(%arg0: i32) -> (i32, i32, i32) {
    %c0_i32 = arith.constant 0 : i32
    %c0_i32_0 = arith.constant 0 : i32
    %c0_i32_1 = arith.constant 0 : i32
    return %arg0, %c0_i32, %c0_i32_0 : i32, i32, i32
  }
  func.func @transform_1(%arg0: i32) -> (i32, i32, i32) {
    %c0_i32 = arith.constant 0 : i32
    %c0_i32_0 = arith.constant 0 : i32
    %c0_i32_1 = arith.constant 0 : i32
    return %arg0, %c0_i32, %c0_i32_0 : i32, i32, i32
  }
  func.func @transform_2(%arg0: i32) -> (i32, i32, i32) {
    %c0_i32 = arith.constant 0 : i32
    %c0_i32_0 = arith.constant 0 : i32
    %c0_i32_1 = arith.constant 0 : i32
    %c0_i32_2 = arith.constant 0 : i32
    return %c0_i32, %c0_i32_0, %c0_i32_1 : i32, i32, i32
  }
  func.func @transform_3(%arg0: i32) -> (i32, i32) {
    %c0_i32 = arith.constant 0 : i32
    %c0_i32_0 = arith.constant 0 : i32
    %c0_i32_1 = arith.constant 0 : i32
    return %c0_i32, %c0_i32_0 : i32, i32
  }
  func.func @transform_4(%arg0: i32) -> (i32, i32) {
    %c0_i32 = arith.constant 0 : i32
    %c0_i32_0 = arith.constant 0 : i32
    %c0_i32_1 = arith.constant 0 : i32
    return %c0_i32, %c0_i32_0 : i32, i32
  }
  func.func @transform_5(%arg0: i32) -> (i32, i32) {
    %c0_i32 = arith.constant 0 : i32
    %c0_i32_0 = arith.constant 0 : i32
    %c0_i32_1 = arith.constant 0 : i32
    return %c0_i32, %c0_i32_0 : i32, i32
  }
  func.func @transform_6(%arg0: i32) -> (i32, i32) {
    %c0_i32 = arith.constant 0 : i32
    %c0_i32_0 = arith.constant 0 : i32
    %c0_i32_1 = arith.constant 0 : i32
    return %c0_i32, %c0_i32_0 : i32, i32
  }
  func.func @transform_7(%arg0: i32) -> (i32, i32) {
    %c0_i32 = arith.constant 0 : i32
    %c0_i32_0 = arith.constant 0 : i32
    %c0_i32_1 = arith.constant 0 : i32
    return %c0_i32, %c0_i32_0 : i32, i32
  }
  func.func @transform_8(%arg0: i32) -> (i32, i32) {
    %c0_i32 = arith.constant 0 : i32
    %c0_i32_0 = arith.constant 0 : i32
    %c0_i32_1 = arith.constant 0 : i32
    return %c0_i32, %c0_i32_0 : i32, i32
  }
  func.func @transform_9(%arg0: i32) -> (i32, i32) {
    %c0_i32 = arith.constant 0 : i32
    %c0_i32_0 = arith.constant 0 : i32
    %c0_i32_1 = arith.constant 0 : i32
    return %c0_i32, %c0_i32_0 : i32, i32
  }
  func.func @transform_10(%arg0: i32) -> (i32, i32) {
    %c0_i32 = arith.constant 0 : i32
    %c0_i32_0 = arith.constant 0 : i32
    %c0_i32_1 = arith.constant 0 : i32
    return %c0_i32, %c0_i32_0 : i32, i32
  }
  func.func @transform_11(%arg0: i32) -> (i32, i32) {
    %c0_i32 = arith.constant 0 : i32
    %c0_i32_0 = arith.constant 0 : i32
    %c0_i32_1 = arith.constant 0 : i32
    return %c0_i32, %c0_i32_0 : i32, i32
  }
  func.func @transform_12(%arg0: i32) -> (i32, i32) {
    %c0_i32 = arith.constant 0 : i32
    %c0_i32_0 = arith.constant 0 : i32
    %c0_i32_1 = arith.constant 0 : i32
    return %c0_i32, %c0_i32_0 : i32, i32
  }
  func.func @transform_13(%arg0: i32) -> (i32, i32, i32) {
    %c0_i32 = arith.constant 0 : i32
    %c0_i32_0 = arith.constant 0 : i32
    %c0_i32_1 = arith.constant 0 : i32
    %c0_i32_2 = arith.constant 0 : i32
    return %c0_i32, %c0_i32_0, %c0_i32_1 : i32, i32, i32
  }
  func.func @transform_14(%arg0: i32) -> (i32, i32) {
    %c0_i32 = arith.constant 0 : i32
    %c0_i32_0 = arith.constant 0 : i32
    %c0_i32_1 = arith.constant 0 : i32
    return %c0_i32, %c0_i32_0 : i32, i32
  }
  func.func @transform_15(%arg0: i32) -> (i32, i32, i32) {
    %c0_i32 = arith.constant 0 : i32
    %c0_i32_0 = arith.constant 0 : i32
    %c0_i32_1 = arith.constant 0 : i32
    return %arg0, %c0_i32, %c0_i32_0 : i32, i32, i32
  }
  func.func @transform_16(%arg0: i32) -> (i32, i32, i32) {
    %c0_i32 = arith.constant 0 : i32
    %c0_i32_0 = arith.constant 0 : i32
    %c0_i32_1 = arith.constant 0 : i32
    return %arg0, %c0_i32, %c0_i32_0 : i32, i32, i32
  }
}

</mosaic_0001>

<llo_original>
// kernel: _lambda_.1
$region0: #{_lambda_.1}
  #allocation0 [shape = 'u32[]', space=smem, size = 0x4, offset = 0x4, fixed_abs, tag = 'smem constant byte address 0x4 - core index']
  #allocation1 [shape = 'u32[72,128]{1,0:T(1,128)}', space=vmem, size = 0x9000, scoped, tag = 'internal scratch']
  %s0 = inlined_call_operand.vmem [shape: f32[2,8,64], index: 0, kind: input, shape index: {}]
  %s1 = inlined_call_operand.vmem [shape: f32[2,32,16], index: 1, kind: input, shape index: {}]
  %s2 = inlined_call_operand.vmem [shape: bf16[4,64,64], index: 2, kind: input, shape index: {}]
  %s3 = inlined_call_operand.vmem [shape: bf16[16,8], index: 3, kind: input, shape index: {}]
  %s4 = inlined_call_operand.vmem [shape: bf16[16,8], index: 4, kind: input, shape index: {}]
  %s5 = inlined_call_operand.vmem [shape: f32[32,32], index: 5, kind: input, shape index: {}]
  %s6 = inlined_call_operand.vmem [shape: f32[16,1], index: 6, kind: input, shape index: {}]
  %s7 = inlined_call_operand.vmem [shape: f32[16,1], index: 7, kind: input, shape index: {}]
  %s8 = inlined_call_operand.vmem [shape: bf16[64,16], index: 8, kind: input, shape index: {}]
  %s9 = inlined_call_operand.vmem [shape: bf16[48,16], index: 9, kind: input, shape index: {}]
  %s10 = inlined_call_operand.vmem [shape: f32[16,16], index: 10, kind: input, shape index: {}]
  %s11 = inlined_call_operand.vmem [shape: bf16[16,16], index: 11, kind: input, shape index: {}]
  %s12 = inlined_call_operand.vmem [shape: bf16[16,2], index: 12, kind: input, shape index: {}]
  %s13 = inlined_call_operand.vmem [shape: f32[2,16,3], index: 13, kind: input, shape index: {}]
  %s14 = inlined_call_operand.vmem [shape: f32[1,3], index: 14, kind: input, shape index: {}]
  %s15 = inlined_call_operand.hbm [shape: f32[2,1,3], index: 15, kind: output, shape index: {0}]
  %s16 = inlined_call_operand.vmem [shape: f32[2,16,2], index: 16, kind: output, shape index: {1}]
  %17 = xla_tuple %s15, %s16
  %s18 = sld [smem:[#allocation0]]
  $region101: #{_lambda_.1} parent=0
    _
  %s20 = ssub.s32 1, %s18
  %s21 = scalar_select 0, %s20, %s18
  $region1: #{_lambda_.1} parent=0
    #allocation2 [shape = 'u8[1024]{0}', space=vmem, size = 0x400, scoped, tag = 'output window, operand 0']
    #allocation3 [shape = 's32[2]{0}', space=sflag, size = 0x8, scoped, tag = 'scoped memory for _lambda_.1']
    %22 = vsyncpa [#allocation3], 0
    %s23 = scalar_lea.sflag [#allocation3], 1
    %24 = vsyncpa %s23, 0
    loop: start=0, step=1, limit=4
    $region2: #{_lambda_.1} parent=1 // loop_pre_header
      _
    $region3: #{_lambda_.1} parent=1 // loop_header
      %s26 = sphi 0, %s30
      %p27 = scmp.ge.s32.totalorder %s26, 4
      %s36 = sphi 0, %s38
      %s39 = sphi 0, %s36
      %s40 = sphi 0, %s39
      %s56 = sphi 0, %s40
      %s62 = sphi 0, %s64
      %s65 = sphi 0, %s62
      %s66 = sphi 0, %s65
      %s82 = sphi 0, %s66
      %s86 = sphi 0, %s86
      %s88 = sphi 0, %s86
      %s89 = sphi 0, %s88
      %s103 = sphi 0, %s89
      %s107 = sphi 0, %s107
      %s109 = sphi 0, %s107
      %s110 = sphi 0, %s109
      %s124 = sphi 0, %s110
      %s128 = sphi 0, %s128
      %s130 = sphi 0, %s128
      %s131 = sphi 0, %s130
      %s145 = sphi 0, %s131
      %s149 = sphi 0, %s149
      %s151 = sphi 0, %s149
      %s152 = sphi 0, %s151
      %s166 = sphi 0, %s152
      %s170 = sphi 0, %s170
      %s172 = sphi 0, %s170
      %s173 = sphi 0, %s172
      %s187 = sphi 0, %s173
      %s191 = sphi 0, %s191
      %s193 = sphi 0, %s191
      %s194 = sphi 0, %s193
      %s208 = sphi 0, %s194
      %s212 = sphi 0, %s212
      %s214 = sphi 0, %s212
      %s215 = sphi 0, %s214
      %s229 = sphi 0, %s215
      %s233 = sphi 0, %s233
      %s235 = sphi 0, %s233
      %s236 = sphi 0, %s235
      %s250 = sphi 0, %s236
      %s254 = sphi 0, %s254
      %s256 = sphi 0, %s254
      %s257 = sphi 0, %s256
      %s271 = sphi 0, %s257
      %s275 = sphi 0, %s275
      %s277 = sphi 0, %s275
      %s278 = sphi 0, %s277
      %s292 = sphi 0, %s278
      %s296 = sphi 0, %s296
      %s298 = sphi 0, %s296
      %s299 = sphi 0, %s298
      %s313 = sphi 0, %s299
      %s317 = sphi 0, %s317
      %s319 = sphi 0, %s317
      %s320 = sphi 0, %s319
      %s334 = sphi 0, %s320
      %s338 = sphi 0, %s338
      %s340 = sphi 0, %s338
      %s341 = sphi 0, %s340
      %s355 = sphi 0, %s341
      %s361 = sphi 0, %s363
      %s364 = sphi 0, %s361
      %s365 = sphi 0, %s364
      %s381 = sphi 0, %s365
      %s387 = sphi 0, %s389
      %s390 = sphi 0, %s387
      %s391 = sphi 0, %s390
      %s407 = sphi 0, %s391
    $region4: #{_lambda_.1} parent=1 // loop_header_branch
      %29 = sbr.rel (%p27) target = $region8
    $region5: #{_lambda_.1} parent=1 // loop_body
      %s31 = ssub.s32 %s26, 1
      %s32 = ssub.s32 %s26, 2
      %s33 = sadd.s32 %s26, 1
      %s34 = ssub.s32 %s26, %s33
      %p35 = scmp.eq.s32.totalorder %s34, 0
      %s37 = sadd.s32 %s36, 1
      %s38 = scalar_select %p35, %s36, %s37
      %p41 = pneg %p35
      %p42 = scmp.eq.s32.totalorder %s26, 1
      %p43 = por %p41, %p42
      %p44 = scmp.ne.s32.totalorder %s36, %s39
      %p45 = scmp.eq.s32.totalorder %s26, 0
      %p46 = por %p44, %p45
      %p47 = scmp.ne.s32.totalorder %s36, %s39
      %p48 = scmp.eq.s32.totalorder %s31, 1
      %p49 = por %p47, %p48
      %p50 = scmp.ne.s32.totalorder %s39, %s40
      %p51 = scmp.eq.s32.totalorder %s31, 0
      %p52 = por %p50, %p51
      %p53 = scmp.ne.s32.totalorder %s39, %s40
      %p54 = scmp.eq.s32.totalorder %s32, 1
      %p55 = por %p53, %p54
      %p57 = scmp.ne.s32.totalorder %s40, %s56
      %p58 = scmp.eq.s32.totalorder %s32, 0
      %p59 = por %p57, %p58
      %s60 = ssub.s32 %s26, %s33
      %p61 = scmp.eq.s32.totalorder %s60, 0
      %s63 = sadd.s32 %s62, 1
      %s64 = scalar_select %p61, %s62, %s63
      %p67 = pneg %p61
      %p68 = scmp.eq.s32.totalorder %s26, 1
      %p69 = por %p67, %p68
      %p70 = scmp.ne.s32.totalorder %s62, %s65
      %p71 = scmp.eq.s32.totalorder %s26, 0
      %p72 = por %p70, %p71
      %p73 = scmp.ne.s32.totalorder %s62, %s65
      %p74 = scmp.eq.s32.totalorder %s31, 1
      %p75 = por %p73, %p74
      %p76 = scmp.ne.s32.totalorder %s65, %s66
      %p77 = scmp.eq.s32.totalorder %s31, 0
      %p78 = por %p76, %p77
      %p79 = scmp.ne.s32.totalorder %s65, %s66
      %p80 = scmp.eq.s32.totalorder %s32, 1
      %p81 = por %p79, %p80
      %p83 = scmp.ne.s32.totalorder %s66, %s82
      %p84 = scmp.eq.s32.totalorder %s32, 0
      %p85 = por %p83, %p84
      %s87 = sadd.s32 %s86, 1
      %p90 = scmp.eq.s32.totalorder %s26, 1
      %p91 = scmp.ne.s32.totalorder %s86, %s88
      %p92 = scmp.eq.s32.totalorder %s26, 0
      %p93 = por %p91, %p92
      %p94 = scmp.ne.s32.totalorder %s86, %s88
      %p95 = scmp.eq.s32.totalorder %s31, 1
      %p96 = por %p94, %p95
      %p97 = scmp.ne.s32.totalorder %s88, %s89
      %p98 = scmp.eq.s32.totalorder %s31, 0
      %p99 = por %p97, %p98
      %p100 = scmp.ne.s32.totalorder %s88, %s89
      %p101 = scmp.eq.s32.totalorder %s32, 1
      %p102 = por %p100, %p101
      %p104 = scmp.ne.s32.totalorder %s89, %s103
      %p105 = scmp.eq.s32.totalorder %s32, 0
      %p106 = por %p104, %p105
      %s108 = sadd.s32 %s107, 1
      %p111 = scmp.eq.s32.totalorder %s26, 1
      %p112 = scmp.ne.s32.totalorder %s107, %s109
      %p113 = scmp.eq.s32.totalorder %s26, 0
      %p114 = por %p112, %p113
      %p115 = scmp.ne.s32.totalorder %s107, %s109
      %p116 = scmp.eq.s32.totalorder %s31, 1
      %p117 = por %p115, %p116
      %p118 = scmp.ne.s32.totalorder %s109, %s110
      %p119 = scmp.eq.s32.totalorder %s31, 0
      %p120 = por %p118, %p119
      %p121 = scmp.ne.s32.totalorder %s109, %s110
      %p122 = scmp.eq.s32.totalorder %s32, 1
      %p123 = por %p121, %p122
      %p125 = scmp.ne.s32.totalorder %s110, %s124
      %p126 = scmp.eq.s32.totalorder %s32, 0
      %p127 = por %p125, %p126
      %s129 = sadd.s32 %s128, 1
      %p132 = scmp.eq.s32.totalorder %s26, 1
      %p133 = scmp.ne.s32.totalorder %s128, %s130
      %p134 = scmp.eq.s32.totalorder %s26, 0
      %p135 = por %p133, %p134
      %p136 = scmp.ne.s32.totalorder %s128, %s130
      %p137 = scmp.eq.s32.totalorder %s31, 1
      %p138 = por %p136, %p137
      %p139 = scmp.ne.s32.totalorder %s130, %s131
      %p140 = scmp.eq.s32.totalorder %s31, 0
      %p141 = por %p139, %p140
      %p142 = scmp.ne.s32.totalorder %s130, %s131
      %p143 = scmp.eq.s32.totalorder %s32, 1
      %p144 = por %p142, %p143
      %p146 = scmp.ne.s32.totalorder %s131, %s145
      %p147 = scmp.eq.s32.totalorder %s32, 0
      %p148 = por %p146, %p147
      %s150 = sadd.s32 %s149, 1
      %p153 = scmp.eq.s32.totalorder %s26, 1
      %p154 = scmp.ne.s32.totalorder %s149, %s151
      %p155 = scmp.eq.s32.totalorder %s26, 0
      %p156 = por %p154, %p155
      %p157 = scmp.ne.s32.totalorder %s149, %s151
      %p158 = scmp.eq.s32.totalorder %s31, 1
      %p159 = por %p157, %p158
      %p160 = scmp.ne.s32.totalorder %s151, %s152
      %p161 = scmp.eq.s32.totalorder %s31, 0
      %p162 = por %p160, %p161
      %p163 = scmp.ne.s32.totalorder %s151, %s152
      %p164 = scmp.eq.s32.totalorder %s32, 1
      %p165 = por %p163, %p164
      %p167 = scmp.ne.s32.totalorder %s152, %s166
      %p168 = scmp.eq.s32.totalorder %s32, 0
      %p169 = por %p167, %p168
      %s171 = sadd.s32 %s170, 1
      %p174 = scmp.eq.s32.totalorder %s26, 1
      %p175 = scmp.ne.s32.totalorder %s170, %s172
      %p176 = scmp.eq.s32.totalorder %s26, 0
      %p177 = por %p175, %p176
      %p178 = scmp.ne.s32.totalorder %s170, %s172
      %p179 = scmp.eq.s32.totalorder %s31, 1
      %p180 = por %p178, %p179
      %p181 = scmp.ne.s32.totalorder %s172, %s173
      %p182 = scmp.eq.s32.totalorder %s31, 0
      %p183 = por %p181, %p182
      %p184 = scmp.ne.s32.totalorder %s172, %s173
      %p185 = scmp.eq.s32.totalorder %s32, 1
      %p186 = por %p184, %p185
      %p188 = scmp.ne.s32.totalorder %s173, %s187
      %p189 = scmp.eq.s32.totalorder %s32, 0
      %p190 = por %p188, %p189
      %s192 = sadd.s32 %s191, 1
      %p195 = scmp.eq.s32.totalorder %s26, 1
      %p196 = scmp.ne.s32.totalorder %s191, %s193
      %p197 = scmp.eq.s32.totalorder %s26, 0
      %p198 = por %p196, %p197
      %p199 = scmp.ne.s32.totalorder %s191, %s193
      %p200 = scmp.eq.s32.totalorder %s31, 1
      %p201 = por %p199, %p200
      %p202 = scmp.ne.s32.totalorder %s193, %s194
      %p203 = scmp.eq.s32.totalorder %s31, 0
      %p204 = por %p202, %p203
      %p205 = scmp.ne.s32.totalorder %s193, %s194
      %p206 = scmp.eq.s32.totalorder %s32, 1
      %p207 = por %p205, %p206
      %p209 = scmp.ne.s32.totalorder %s194, %s208
      %p210 = scmp.eq.s32.totalorder %s32, 0
      %p211 = por %p209, %p210
      %s213 = sadd.s32 %s212, 1
      %p216 = scmp.eq.s32.totalorder %s26, 1
      %p217 = scmp.ne.s32.totalorder %s212, %s214
      %p218 = scmp.eq.s32.totalorder %s26, 0
      %p219 = por %p217, %p218
      %p220 = scmp.ne.s32.totalorder %s212, %s214
      %p221 = scmp.eq.s32.totalorder %s31, 1
      %p222 = por %p220, %p221
      %p223 = scmp.ne.s32.totalorder %s214, %s215
      %p224 = scmp.eq.s32.totalorder %s31, 0
      %p225 = por %p223, %p224
      %p226 = scmp.ne.s32.totalorder %s214, %s215
      %p227 = scmp.eq.s32.totalorder %s32, 1
      %p228 = por %p226, %p227
      %p230 = scmp.ne.s32.totalorder %s215, %s229
      %p231 = scmp.eq.s32.totalorder %s32, 0
      %p232 = por %p230, %p231
      %s234 = sadd.s32 %s233, 1
      %p237 = scmp.eq.s32.totalorder %s26, 1
      %p238 = scmp.ne.s32.totalorder %s233, %s235
      %p239 = scmp.eq.s32.totalorder %s26, 0
      %p240 = por %p238, %p239
      %p241 = scmp.ne.s32.totalorder %s233, %s235
      %p242 = scmp.eq.s32.totalorder %s31, 1
      %p243 = por %p241, %p242
      %p244 = scmp.ne.s32.totalorder %s235, %s236
      %p245 = scmp.eq.s32.totalorder %s31, 0
      %p246 = por %p244, %p245
      %p247 = scmp.ne.s32.totalorder %s235, %s236
      %p248 = scmp.eq.s32.totalorder %s32, 1
      %p249 = por %p247, %p248
      %p251 = scmp.ne.s32.totalorder %s236, %s250
      %p252 = scmp.eq.s32.totalorder %s32, 0
      %p253 = por %p251, %p252
      %s255 = sadd.s32 %s254, 1
      %p258 = scmp.eq.s32.totalorder %s26, 1
      %p259 = scmp.ne.s32.totalorder %s254, %s256
      %p260 = scmp.eq.s32.totalorder %s26, 0
      %p261 = por %p259, %p260
      %p262 = scmp.ne.s32.totalorder %s254, %s256
      %p263 = scmp.eq.s32.totalorder %s31, 1
      %p264 = por %p262, %p263
      %p265 = scmp.ne.s32.totalorder %s256, %s257
      %p266 = scmp.eq.s32.totalorder %s31, 0
      %p267 = por %p265, %p266
      %p268 = scmp.ne.s32.totalorder %s256, %s257
      %p269 = scmp.eq.s32.totalorder %s32, 1
      %p270 = por %p268, %p269
      %p272 = scmp.ne.s32.totalorder %s257, %s271
      %p273 = scmp.eq.s32.totalorder %s32, 0
      %p274 = por %p272, %p273
      %s276 = sadd.s32 %s275, 1
      %p279 = scmp.eq.s32.totalorder %s26, 1
      %p280 = scmp.ne.s32.totalorder %s275, %s277
      %p281 = scmp.eq.s32.totalorder %s26, 0
      %p282 = por %p280, %p281
      %p283 = scmp.ne.s32.totalorder %s275, %s277
      %p284 = scmp.eq.s32.totalorder %s31, 1
      %p285 = por %p283, %p284
      %p286 = scmp.ne.s32.totalorder %s277, %s278
      %p287 = scmp.eq.s32.totalorder %s31, 0
      %p288 = por %p286, %p287
      %p289 = scmp.ne.s32.totalorder %s277, %s278
      %p290 = scmp.eq.s32.totalorder %s32, 1
      %p291 = por %p289, %p290
      %p293 = scmp.ne.s32.totalorder %s278, %s292
      %p294 = scmp.eq.s32.totalorder %s32, 0
      %p295 = por %p293, %p294
      %s297 = sadd.s32 %s296, 1
      %p300 = scmp.eq.s32.totalorder %s26, 1
      %p301 = scmp.ne.s32.totalorder %s296, %s298
      %p302 = scmp.eq.s32.totalorder %s26, 0
      %p303 = por %p301, %p302
      %p304 = scmp.ne.s32.totalorder %s296, %s298
      %p305 = scmp.eq.s32.totalorder %s31, 1
      %p306 = por %p304, %p305
      %p307 = scmp.ne.s32.totalorder %s298, %s299
      %p308 = scmp.eq.s32.totalorder %s31, 0
      %p309 = por %p307, %p308
      %p310 = scmp.ne.s32.totalorder %s298, %s299
      %p311 = scmp.eq.s32.totalorder %s32, 1
      %p312 = por %p310, %p311
      %p314 = scmp.ne.s32.totalorder %s299, %s313
      %p315 = scmp.eq.s32.totalorder %s32, 0
      %p316 = por %p314, %p315
      %s318 = sadd.s32 %s317, 1
      %p321 = scmp.eq.s32.totalorder %s26, 1
      %p322 = scmp.ne.s32.totalorder %s317, %s319
      %p323 = scmp.eq.s32.totalorder %s26, 0
      %p324 = por %p322, %p323
      %p325 = scmp.ne.s32.totalorder %s317, %s319
      %p326 = scmp.eq.s32.totalorder %s31, 1
      %p327 = por %p325, %p326
      %p328 = scmp.ne.s32.totalorder %s319, %s320
      %p329 = scmp.eq.s32.totalorder %s31, 0
      %p330 = por %p328, %p329
      %p331 = scmp.ne.s32.totalorder %s319, %s320
      %p332 = scmp.eq.s32.totalorder %s32, 1
      %p333 = por %p331, %p332
      %p335 = scmp.ne.s32.totalorder %s320, %s334
      %p336 = scmp.eq.s32.totalorder %s32, 0
      %p337 = por %p335, %p336
      %s339 = sadd.s32 %s338, 1
      %p342 = scmp.eq.s32.totalorder %s26, 1
      %p343 = scmp.ne.s32.totalorder %s338, %s340
      %p344 = scmp.eq.s32.totalorder %s26, 0
      %p345 = por %p343, %p344
      %p346 = scmp.ne.s32.totalorder %s338, %s340
      %p347 = scmp.eq.s32.totalorder %s31, 1
      %p348 = por %p346, %p347
      %p349 = scmp.ne.s32.totalorder %s340, %s341
      %p350 = scmp.eq.s32.totalorder %s31, 0
      %p351 = por %p349, %p350
      %p352 = scmp.ne.s32.totalorder %s340, %s341
      %p353 = scmp.eq.s32.totalorder %s32, 1
      %p354 = por %p352, %p353
      %p356 = scmp.ne.s32.totalorder %s341, %s355
      %p357 = scmp.eq.s32.totalorder %s32, 0
      %p358 = por %p356, %p357
      %s359 = ssub.s32 %s26, %s33
      %p360 = scmp.eq.s32.totalorder %s359, 0
      %s362 = sadd.s32 %s361, 1
      %s363 = scalar_select %p360, %s361, %s362
      %p366 = pneg %p360
      %p367 = scmp.eq.s32.totalorder %s26, 1
      %p368 = por %p366, %p367
      %p369 = scmp.ne.s32.totalorder %s361, %s364
      %p370 = scmp.eq.s32.totalorder %s26, 0
      %p371 = por %p369, %p370
      %p372 = scmp.ne.s32.totalorder %s361, %s364
      %p373 = scmp.eq.s32.totalorder %s31, 1
      %p374 = por %p372, %p373
      %p375 = scmp.ne.s32.totalorder %s364, %s365
      %p376 = scmp.eq.s32.totalorder %s31, 0
      %p377 = por %p375, %p376
      %p378 = scmp.ne.s32.totalorder %s364, %s365
      %p379 = scmp.eq.s32.totalorder %s32, 1
      %p380 = por %p378, %p379
      %p382 = scmp.ne.s32.totalorder %s365, %s381
      %p383 = scmp.eq.s32.totalorder %s32, 0
      %p384 = por %p382, %p383
      %s385 = ssub.s32 %s26, %s33
      %p386 = scmp.eq.s32.totalorder %s385, 0
      %s388 = sadd.s32 %s387, 1
      %s389 = scalar_select %p386, %s387, %s388
      %p392 = pneg %p386
      %p393 = scmp.eq.s32.totalorder %s26, 1
      %p394 = por %p392, %p393
      %p395 = scmp.ne.s32.totalorder %s387, %s390
      %p396 = scmp.eq.s32.totalorder %s26, 0
      %p397 = por %p395, %p396
      %p398 = scmp.ne.s32.totalorder %s387, %s390
      %p399 = scmp.eq.s32.totalorder %s31, 1
      %p400 = por %p398, %p399
      %p401 = scmp.ne.s32.totalorder %s390, %s391
      %p402 = scmp.eq.s32.totalorder %s31, 0
      %p403 = por %p401, %p402
      %p404 = scmp.ne.s32.totalorder %s390, %s391
      %p405 = scmp.eq.s32.totalorder %s32, 1
      %p406 = por %p404, %p405
      %p408 = scmp.ne.s32.totalorder %s391, %s407
      %p409 = scmp.eq.s32.totalorder %s32, 0
      %p410 = por %p408, %p409
      %p411 = scmp.le.s32.totalorder 1, %s26
      %p412 = scmp.lt.s32.totalorder %s26, 3
      %p413 = pnand %p411, %p412
      %p414 = pneg %p413
      // Predicated region
      $region9: #{_lambda_.1} parent=5 // pred_check
        _
      $region10: #{_lambda_.1} parent=5 // pred_check_branch
        %416 = sbr.rel (%p413) target = $region12
      $region11: #{_lambda_.1} parent=5 // pred_region
        %s417 = ssub.s32 %s26, 1
        // Predicated region
        $region13: #{_lambda_.1} parent=11 // pred_check
          %p418 = pneg %p99
        $region14: #{_lambda_.1} parent=11 // pred_check_branch
          %420 = sbr.rel (%p418) target = $region16
        $region15: #{_lambda_.1} parent=11 // pred_region
          _
        $region16: #{_lambda_.1} parent=11 // pred_fallthru
          _
        // Predicated region
        $region17: #{_lambda_.1} parent=11 // pred_check
          %p421 = pneg %p120
        $region18: #{_lambda_.1} parent=11 // pred_check_branch
          %423 = sbr.rel (%p421) target = $region20
        $region19: #{_lambda_.1} parent=11 // pred_region
          _
        $region20: #{_lambda_.1} parent=11 // pred_fallthru
          _
        // Predicated region
        $region21: #{_lambda_.1} parent=11 // pred_check
          %p424 = pneg %p141
        $region22: #{_lambda_.1} parent=11 // pred_check_branch
          %426 = sbr.rel (%p424) target = $region24
        $region23: #{_lambda_.1} parent=11 // pred_region
          _
        $region24: #{_lambda_.1} parent=11 // pred_fallthru
          _
        // Predicated region
        $region25: #{_lambda_.1} parent=11 // pred_check
          %p427 = pneg %p162
        $region26: #{_lambda_.1} parent=11 // pred_check_branch
          %429 = sbr.rel (%p427) target = $region28
        $region27: #{_lambda_.1} parent=11 // pred_region
          _
        $region28: #{_lambda_.1} parent=11 // pred_fallthru
          _
        // Predicated region
        $region29: #{_lambda_.1} parent=11 // pred_check
          %p430 = pneg %p183
        $region30: #{_lambda_.1} parent=11 // pred_check_branch
          %432 = sbr.rel (%p430) target = $region32
        $region31: #{_lambda_.1} parent=11 // pred_region
          _
        $region32: #{_lambda_.1} parent=11 // pred_fallthru
          _
        // Predicated region
        $region33: #{_lambda_.1} parent=11 // pred_check
          %p433 = pneg %p204
        $region34: #{_lambda_.1} parent=11 // pred_check_branch
          %435 = sbr.rel (%p433) target = $region36
        $region35: #{_lambda_.1} parent=11 // pred_region
          _
        $region36: #{_lambda_.1} parent=11 // pred_fallthru
          _
        // Predicated region
        $region37: #{_lambda_.1} parent=11 // pred_check
          %p436 = pneg %p225
        $region38: #{_lambda_.1} parent=11 // pred_check_branch
          %438 = sbr.rel (%p436) target = $region40
        $region39: #{_lambda_.1} parent=11 // pred_region
          _
        $region40: #{_lambda_.1} parent=11 // pred_fallthru
          _
        // Predicated region
        $region41: #{_lambda_.1} parent=11 // pred_check
          %p439 = pneg %p246
        $region42: #{_lambda_.1} parent=11 // pred_check_branch
          %441 = sbr.rel (%p439) target = $region44
        $region43: #{_lambda_.1} parent=11 // pred_region
          _
        $region44: #{_lambda_.1} parent=11 // pred_fallthru
          _
        // Predicated region
        $region45: #{_lambda_.1} parent=11 // pred_check
          %p442 = pneg %p267
        $region46: #{_lambda_.1} parent=11 // pred_check_branch
          %444 = sbr.rel (%p442) target = $region48
        $region47: #{_lambda_.1} parent=11 // pred_region
          _
        $region48: #{_lambda_.1} parent=11 // pred_fallthru
          _
        // Predicated region
        $region49: #{_lambda_.1} parent=11 // pred_check
          %p445 = pneg %p288
        $region50: #{_lambda_.1} parent=11 // pred_check_branch
          %447 = sbr.rel (%p445) target = $region52
        $region51: #{_lambda_.1} parent=11 // pred_region
          _
        $region52: #{_lambda_.1} parent=11 // pred_fallthru
          _
        // Predicated region
        $region53: #{_lambda_.1} parent=11 // pred_check
          %p448 = pneg %p309
        $region54: #{_lambda_.1} parent=11 // pred_check_branch
          %450 = sbr.rel (%p448) target = $region56
        $region55: #{_lambda_.1} parent=11 // pred_region
          _
        $region56: #{_lambda_.1} parent=11 // pred_fallthru
          _
        // Predicated region
        $region57: #{_lambda_.1} parent=11 // pred_check
          %p451 = pneg %p330
        $region58: #{_lambda_.1} parent=11 // pred_check_branch
          %453 = sbr.rel (%p451) target = $region60
        $region59: #{_lambda_.1} parent=11 // pred_region
          _
        $region60: #{_lambda_.1} parent=11 // pred_fallthru
          _
        // Predicated region
        $region61: #{_lambda_.1} parent=11 // pred_check
          %p454 = pneg %p351
        $region62: #{_lambda_.1} parent=11 // pred_check_branch
          %456 = sbr.rel (%p454) target = $region64
        $region63: #{_lambda_.1} parent=11 // pred_region
          _
        $region64: #{_lambda_.1} parent=11 // pred_fallthru
          _
      $region12: #{_lambda_.1} parent=5 // pred_fallthru
        _
      %p457 = scmp.lt.s32.totalorder %s26, 2
      // Predicated region
      $region65: #{_lambda_.1} parent=5 // pred_check
        %p458 = pneg %p457
      $region66: #{_lambda_.1} parent=5 // pred_check_branch
        %460 = sbr.rel (%p458) target = $region68
      $region67: #{_lambda_.1} parent=5 // pred_region
        // Predicated region
        $region69: #{_lambda_.1} parent=67 // pred_check
          %p461 = pneg %p46
        $region70: #{_lambda_.1} parent=67 // pred_check_branch
          %463 = sbr.rel (%p461) target = $region72
        $region71: #{_lambda_.1} parent=67 // pred_region
          %p464 = scmp.lt.s32.totalorder %s26, 1
          %s465 = scalar_select %p464, %s26, 1
          %s466 = smul.addr %s465, 8
          %s467 = scalar_lea.vmem %s0, %s466
        $region72: #{_lambda_.1} parent=67 // pred_fallthru
          _
        // Predicated region
        $region73: #{_lambda_.1} parent=67 // pred_check
          %p468 = pneg %p72
        $region74: #{_lambda_.1} parent=67 // pred_check_branch
          %470 = sbr.rel (%p468) target = $region76
        $region75: #{_lambda_.1} parent=67 // pred_region
          %p471 = scmp.lt.s32.totalorder %s26, 1
          %s472 = scalar_select %p471, %s26, 1
          %s473 = smul.addr %s472, 4
          %s474 = smul.addr %s473, 8
          %s475 = scalar_lea.vmem %s1, %s474
        $region76: #{_lambda_.1} parent=67 // pred_fallthru
          _
      $region68: #{_lambda_.1} parent=5 // pred_fallthru
        _
      %p476 = scmp.le.s32.totalorder 1, %s26
      %p477 = scmp.lt.s32.totalorder %s26, 3
      %p478 = pnand %p476, %p477
      %p479 = pneg %p478
      // Predicated region
      $region77: #{_lambda_.1} parent=5 // pred_check
        _
      $region78: #{_lambda_.1} parent=5 // pred_check_branch
        %481 = sbr.rel (%p478) target = $region80
      $region79: #{_lambda_.1} parent=5 // pred_region
        %s482 = ssub.s32 %s26, 1
        %p483 = scmp.lt.s32.totalorder %s31, 1
        %s484 = scalar_select %p483, %s31, 1
        %s485 = smul.addr %s484, 8
        %s486 = scalar_lea.vmem %s0, %s485
        %p487 = pneg %p52
        %p488 = pneg %p49
        %p489 = scmp.lt.s32.totalorder %s31, 1
        %s490 = scalar_select %p489, %s31, 1
        %s491 = smul.addr %s490, 4
        %s492 = smul.addr %s491, 8
        %s493 = scalar_lea.vmem %s1, %s492
        %p494 = pneg %p78
        %p495 = pneg %p75
        %p496 = pneg %p99
        %p497 = pneg %p96
        %p498 = pneg %p120
        %p499 = pneg %p117
        %p500 = pneg %p141
        %p501 = pneg %p138
        %p502 = pneg %p162
        %p503 = pneg %p159
        %p504 = pneg %p183
        %p505 = pneg %p180
        %p506 = pneg %p204
        %p507 = pneg %p201
        %p508 = pneg %p225
        %p509 = pneg %p222
        %p510 = pneg %p246
        %p511 = pneg %p243
        %p512 = pneg %p267
        %p513 = pneg %p264
        %p514 = pneg %p288
        %p515 = pneg %p285
        %p516 = pneg %p309
        %p517 = pneg %p306
        %p518 = pneg %p330
        %p519 = pneg %p327
        %p520 = pneg %p351
        %p521 = pneg %p348
        %p522 = pneg %p377
        %p523 = pneg %p374
        %s524 = sand.u32 %s364, 1
        %s525 = scalar_lea.sflag [#allocation3], %s524
        %s526 = sand.u32 %s364, 1
        %s527 = scalar_lea.vmem [#allocation2], %s526
        %p528 = pneg %p403
        %p529 = pneg %p400
        %p530 = scmp.lt.s32.totalorder %s31, 1
        %s531 = scalar_select %p530, %s31, 1
        %s532 = smul.addr %s531, 2
        %s533 = smul.addr %s532, 8
        %s534 = scalar_lea.vmem %s16, %s533
        %p535 = scmp.lt.s32.totalorder %s31, 1
        %s536 = scalar_select %p535, %s31, 1
        %s537 = smul.addr %s536, 8
        %s538 = scalar_lea.vmem %s0, %s537
        %p539 = scmp.lt.s32.totalorder %s31, 1
        %s540 = scalar_select %p539, %s31, 1
        %s541 = smul.addr %s540, 4
        %s542 = smul.addr %s541, 8
        %s543 = scalar_lea.vmem %s1, %s542
        %p544 = scmp.lt.s32.totalorder %s31, 1
        %s545 = scalar_select %p544, %s31, 1
        %s546 = smul.addr %s545, 2
        %s547 = smul.addr %s546, 8
        %s548 = scalar_lea.vmem %s16, %s547
        %v550 = vld [vmem:[%s538] sm:$0xff]
        %v551 = vld [vmem:[%s3] sm:$0xf]
        %v552 = vld [vmem:[%s3 + $0x4] sm:$0xf]
        %v553 = vpack.c.bf16 %v550, %v550
        %v556 = vunpack.c.l.b16 %v551
        %v557 = vunpack.c.l.b16 %v552
        %v558 = vpack.c.b16 %v557, %v556
        %vm559 = vcmask 64512
        %v561 = vsel %vm559, %v558, 0
        %vm563 = vcmask 1043456
        %v565 = vsel %vm563, %v553, 0
        %567 = vmatpush.bf16.msra.mxu0 0
        %568 = vmatpush.bf16.msra.mxu0 0
        %569 = vmatpush.bf16.msra.mxu0 0
        %570 = vmatpush.bf16.msra.mxu0 0
        %571 = vmatpush.bf16.msra.mxu0 0
        %572 = vmatpush.bf16.msra.mxu0 0
        %573 = vmatpush.bf16.msra.mxu0 0
        %574 = vmatpush.bf16.msra.mxu0 %v565
        %575 = vmatmul.bf16.gmra.mxu0 %v561
        %v576 = vpop.f32.mrf.mxu0
        %v577 = vadd.f32 0.0, %v576
        %v578 = vpop.f32.mrf.mxu0
        %v579 = vadd.f32 0.0, %v578
        %580 = vdwg.mxu0
        %v583 = vrot.slane %v577, 4
        %v584 = vrot.slane %v579, 4
        %v587 = vpack.c.bf16 %v577, %v577
        %v588 = vpack.c.bf16 %v583, %v583
        %v589 = vpack.c.bf16 %v579, %v579
        %v590 = vpack.c.bf16 %v584, %v584
        %v591 = vld [vmem:[%s2] sm:$0xf]
        %v592 = vld [vmem:[%s2 + $0x4] sm:$0xf]
        %v593 = vld [vmem:[%s2 + $0x8] sm:$0xf]
        %v594 = vld [vmem:[%s2 + $0xc] sm:$0xf]
        %v595 = vld [vmem:[%s2 + $0x10] sm:$0xf]
        %v596 = vld [vmem:[%s2 + $0x14] sm:$0xf]
        %v597 = vld [vmem:[%s2 + $0x18] sm:$0xf]
        %v598 = vld [vmem:[%s2 + $0x1c] sm:$0xf]
        %v599 = vld [vmem:[%s2 + $0x20] sm:$0xf]
        %v600 = vld [vmem:[%s2 + $0x24] sm:$0xf]
        %v601 = vld [vmem:[%s2 + $0x28] sm:$0xf]
        %v602 = vld [vmem:[%s2 + $0x2c] sm:$0xf]
        %v603 = vld [vmem:[%s2 + $0x30] sm:$0xf]
        %v604 = vld [vmem:[%s2 + $0x34] sm:$0xf]
        %v605 = vld [vmem:[%s2 + $0x38] sm:$0xf]
        %v606 = vld [vmem:[%s2 + $0x3c] sm:$0xf]
        %v607 = vld [vmem:[%s2 + $0x40] sm:$0xf]
        %v608 = vld [vmem:[%s2 + $0x44] sm:$0xf]
        %v609 = vld [vmem:[%s2 + $0x48] sm:$0xf]
        %v610 = vld [vmem:[%s2 + $0x4c] sm:$0xf]
        %v611 = vld [vmem:[%s2 + $0x50] sm:$0xf]
        %v612 = vld [vmem:[%s2 + $0x54] sm:$0xf]
        %v613 = vld [vmem:[%s2 + $0x58] sm:$0xf]
        %v614 = vld [vmem:[%s2 + $0x5c] sm:$0xf]
        %v615 = vld [vmem:[%s2 + $0x60] sm:$0xf]
        %v616 = vld [vmem:[%s2 + $0x64] sm:$0xf]
        %v617 = vld [vmem:[%s2 + $0x68] sm:$0xf]
        %v618 = vld [vmem:[%s2 + $0x6c] sm:$0xf]
        %v619 = vld [vmem:[%s2 + $0x70] sm:$0xf]
        %v620 = vld [vmem:[%s2 + $0x74] sm:$0xf]
        %v621 = vld [vmem:[%s2 + $0x78] sm:$0xf]
        %v622 = vld [vmem:[%s2 + $0x7c] sm:$0xf]
        %v631 = vunpack.c.l.b16 %v591
        %v632 = vunpack.c.l.b16 %v592
        %v633 = vunpack.c.l.b16 %v593
        %v634 = vunpack.c.l.b16 %v594
        %v635 = vunpack.c.l.b16 %v595
        %v636 = vunpack.c.l.b16 %v596
        %v637 = vunpack.c.l.b16 %v597
        %v638 = vunpack.c.l.b16 %v598
        %v639 = vpack.c.b16 %v632, %v631
        %v640 = vpack.c.b16 %v634, %v633
        %v641 = vpack.c.b16 %v636, %v635
        %v642 = vpack.c.b16 %v638, %v637
        %vm647 = vcmask 523264
        %v649 = vsel %vm647, %v587, 0
        %651 = vmatpush.bf16.msra.mxu0 0
        %652 = vmatpush.bf16.msra.mxu0 0
        %653 = vmatpush.bf16.msra.mxu0 0
        %654 = vmatpush.bf16.msra.mxu0 0
        %655 = vmatpush.bf16.msra.mxu0 %v642
        %656 = vmatpush.bf16.msra.mxu0 %v641
        %657 = vmatpush.bf16.msra.mxu0 %v640
        %658 = vmatpush.bf16.msra.mxu0 %v639
        %659 = vmatmul.bf16.gmra.mxu0 %v649
        %v660 = vpop.f32.mrf.mxu0
        %v661 = vadd.f32 0.0, %v660
        %v662 = vpop.f32.mrf.mxu0
        %663 = vdwg.mxu0
        %v672 = vunpack.c.l.b16 %v599
        %v673 = vunpack.c.l.b16 %v600
        %v674 = vunpack.c.l.b16 %v601
        %v675 = vunpack.c.l.b16 %v602
        %v676 = vunpack.c.l.b16 %v603
        %v677 = vunpack.c.l.b16 %v604
        %v678 = vunpack.c.l.b16 %v605
        %v679 = vunpack.c.l.b16 %v606
        %v680 = vpack.c.b16 %v673, %v672
        %v681 = vpack.c.b16 %v675, %v674
        %v682 = vpack.c.b16 %v677, %v676
        %v683 = vpack.c.b16 %v679, %v678
        %v689 = vsel %vm647, %v588, 0
        %691 = vmatpush.bf16.msra.mxu0 0
        %692 = vmatpush.bf16.msra.mxu0 0
        %693 = vmatpush.bf16.msra.mxu0 0
        %694 = vmatpush.bf16.msra.mxu0 0
        %695 = vmatpush.bf16.msra.mxu0 %v683
        %696 = vmatpush.bf16.msra.mxu0 %v682
        %697 = vmatpush.bf16.msra.mxu0 %v681
        %698 = vmatpush.bf16.msra.mxu0 %v680
        %699 = vmatmul.bf16.gmra.mxu0 %v689
        %v700 = vpop.f32.mrf.mxu0
        %v701 = vadd.f32 0.0, %v700
        %v702 = vpop.f32.mrf.mxu0
        %703 = vdwg.mxu0
        %v712 = vunpack.c.l.b16 %v607
        %v713 = vunpack.c.l.b16 %v608
        %v714 = vunpack.c.l.b16 %v609
        %v715 = vunpack.c.l.b16 %v610
        %v716 = vunpack.c.l.b16 %v611
        %v717 = vunpack.c.l.b16 %v612
        %v718 = vunpack.c.l.b16 %v613
        %v719 = vunpack.c.l.b16 %v614
        %v720 = vpack.c.b16 %v713, %v712
        %v721 = vpack.c.b16 %v715, %v714
        %v722 = vpack.c.b16 %v717, %v716
        %v723 = vpack.c.b16 %v719, %v718
        %v729 = vsel %vm647, %v589, 0
        %731 = vmatpush.bf16.msra.mxu0 0
        %732 = vmatpush.bf16.msra.mxu0 0
        %733 = vmatpush.bf16.msra.mxu0 0
        %734 = vmatpush.bf16.msra.mxu0 0
        %735 = vmatpush.bf16.msra.mxu0 %v723
        %736 = vmatpush.bf16.msra.mxu0 %v722
        %737 = vmatpush.bf16.msra.mxu0 %v721
        %738 = vmatpush.bf16.msra.mxu0 %v720
        %739 = vmatmul.bf16.gmra.mxu0 %v729
        %v740 = vpop.f32.mrf.mxu0
        %v741 = vadd.f32 0.0, %v740
        %v742 = vpop.f32.mrf.mxu0
        %743 = vdwg.mxu0
        %v752 = vunpack.c.l.b16 %v615
        %v753 = vunpack.c.l.b16 %v616
        %v754 = vunpack.c.l.b16 %v617
        %v755 = vunpack.c.l.b16 %v618
        %v756 = vunpack.c.l.b16 %v619
        %v757 = vunpack.c.l.b16 %v620
        %v758 = vunpack.c.l.b16 %v621
        %v759 = vunpack.c.l.b16 %v622
        %v760 = vpack.c.b16 %v753, %v752
        %v761 = vpack.c.b16 %v755, %v754
        %v762 = vpack.c.b16 %v757, %v756
        %v763 = vpack.c.b16 %v759, %v758
        %v769 = vsel %vm647, %v590, 0
        %771 = vmatpush.bf16.msra.mxu0 0
        %772 = vmatpush.bf16.msra.mxu0 0
        %773 = vmatpush.bf16.msra.mxu0 0
        %774 = vmatpush.bf16.msra.mxu0 0
        %775 = vmatpush.bf16.msra.mxu0 %v763
        %776 = vmatpush.bf16.msra.mxu0 %v762
        %777 = vmatpush.bf16.msra.mxu0 %v761
        %778 = vmatpush.bf16.msra.mxu0 %v760
        %779 = vmatmul.bf16.gmra.mxu0 %v769
        %v780 = vpop.f32.mrf.mxu0
        %v781 = vadd.f32 0.0, %v780
        %v782 = vpop.f32.mrf.mxu0
        %783 = vdwg.mxu0
        %v784 = vld [vmem:[%s543] sm:$0xff]
        %v785 = vld [vmem:[%s543 + $0x8] sm:$0xff]
        %v786 = vld [vmem:[%s543 + $0x10] sm:$0xff]
        %v787 = vld [vmem:[%s543 + $0x18] sm:$0xff]
        %vm788 = vcmask 130048
        %v790 = vsel %vm788, %v784, 0
        %v793 = vsel %vm788, %v785, 0
        %v796 = vsel %vm788, %v786, 0
        %v799 = vsel %vm788, %v787, 0
        %801 = vmatpush.xpose.msra.mxu0 0.0
        %802 = vmatpush.xpose.msra.mxu0 0.0
        %803 = vmatpush.xpose.msra.mxu0 0.0
        %804 = vmatpush.xpose.msra.mxu0 0.0
        %805 = vmatpush.xpose.msra.mxu0 0.0
        %806 = vmatpush.xpose.msra.mxu0 0.0
        %807 = vmatpush.xpose.msra.mxu0 0.0
        %808 = vmatpush.xpose.msra.mxu0 0.0
        %809 = vmatpush.xpose.msra.mxu0 0.0
        %810 = vmatpush.xpose.msra.mxu0 0.0
        %811 = vmatpush.xpose.msra.mxu0 0.0
        %812 = vmatpush.xpose.msra.mxu0 0.0
        %813 = vmatpush.xpose.msra.mxu0 %v799
        %814 = vmatpush.xpose.msra.mxu0 %v796
        %815 = vmatpush.xpose.msra.mxu0 %v793
        %816 = vmatpush.xpose.msra.mxu0 %v790
        %817 = vmatmul.f32.gmra.mxu0 %v790
        %v818 = vpop.f32.mrf.mxu0
        %v819 = vadd.f32 0.0, %v818
        %820 = vmatmul.f32.gmra.mxu0 %v793
        %v821 = vpop.f32.mrf.mxu0
        %v822 = vadd.f32 0.0, %v821
        %823 = vmatmul.f32.gmra.mxu0 %v796
        %v824 = vpop.f32.mrf.mxu0
        %v825 = vadd.f32 0.0, %v824
        %826 = vmatmul.f32.gmra.mxu0 %v799
        %v827 = vpop.f32.mrf.mxu0
        %v828 = vadd.f32 0.0, %v827
        %829 = vdwg.mxu0
        %v830 = vmul.f32 %v819, 0.0625
        %v831 = vmul.f32 %v822, 0.0625
        %v832 = vmul.f32 %v825, 0.0625
        %v833 = vmul.f32 %v828, 0.0625
        %v834 = vld [vmem:[%s5] sm:$0xff]
        %v835 = vld [vmem:[%s5 + $0x8] sm:$0xff]
        %v836 = vld [vmem:[%s5 + $0x10] sm:$0xff]
        %v837 = vld [vmem:[%s5 + $0x18] sm:$0xff]
        %v838 = vadd.f32 %v830, %v834
        %v839 = vadd.f32 %v831, %v835
        %v840 = vadd.f32 %v832, %v836
        %v841 = vadd.f32 %v833, %v837
        %vm842 = vcmask 261120
        %v843 = vsel %vm842, %v838, -inf
        %844 = vmax.xlane.f32.xlu0 %v843
        %v845 = vpop.xlane.xlu0 %844
        %v846 = vsel %vm842, %v839, -inf
        %847 = vmax.xlane.f32.xlu0 %v846
        %v848 = vpop.xlane.xlu0 %847
        %v849 = vsel %vm842, %v840, -inf
        %850 = vmax.xlane.f32.xlu0 %v849
        %v851 = vpop.xlane.xlu0 %850
        %v852 = vsel %vm842, %v841, -inf
        %853 = vmax.xlane.f32.xlu0 %v852
        %v854 = vpop.xlane.xlu0 %853
        %v855 = vsub.f32 %v838, %v845
        %v856 = vsub.f32 %v839, %v848
        %v857 = vsub.f32 %v840, %v851
        %v858 = vsub.f32 %v841, %v854
        %v859 = vmul.f32 %v855, 1.442695
        %v860 = vpow.pop %v859
        %v861 = vmul.f32 %v856, 1.442695
        %v862 = vpow.pop %v861
        %v863 = vmul.f32 %v857, 1.442695
        %v864 = vpow.pop %v863
        %v865 = vmul.f32 %v858, 1.442695
        %v866 = vpow.pop %v865
        %v867 = vsel %vm842, %v860, 0.0
        %868 = vadd.xlane.f32.xlu0 %v867
        %v869 = vpop.xlane.xlu0 %868
        %v870 = vsel %vm842, %v862, 0.0
        %871 = vadd.xlane.f32.xlu0 %v870
        %v872 = vpop.xlane.xlu0 %871
        %v873 = vsel %vm842, %v864, 0.0
        %874 = vadd.xlane.f32.xlu0 %v873
        %v875 = vpop.xlane.xlu0 %874
        %v876 = vsel %vm842, %v866, 0.0
        %877 = vadd.xlane.f32.xlu0 %v876
        %v878 = vpop.xlane.xlu0 %877
        %v879 = vrcp.pop %v869
        %v880 = vrcp.pop %v872
        %v881 = vrcp.pop %v875
        %v882 = vrcp.pop %v878
        %v883 = vmul.f32 %v860, %v879
        %v884 = vmul.f32 %v862, %v880
        %v885 = vmul.f32 %v864, %v881
        %v886 = vmul.f32 %v866, %v882
        %v888 = vsel %vm842, %v883, 0
        %v891 = vsel %vm842, %v884, 0
        %v894 = vsel %vm842, %v885, 0
        %v897 = vsel %vm842, %v886, 0
        %899 = vmatpush.msra.mxu0 0.0
        %900 = vmatpush.msra.mxu0 0.0
        %901 = vmatpush.msra.mxu0 0.0
        %902 = vmatpush.msra.mxu0 0.0
        %903 = vmatpush.msra.mxu0 0.0
        %904 = vmatpush.msra.mxu0 0.0
        %905 = vmatpush.msra.mxu0 0.0
        %906 = vmatpush.msra.mxu0 0.0
        %907 = vmatpush.msra.mxu0 0.0
        %908 = vmatpush.msra.mxu0 0.0
        %909 = vmatpush.msra.mxu0 0.0
        %910 = vmatpush.msra.mxu0 0.0
        %911 = vmatpush.msra.mxu0 %v787
        %912 = vmatpush.msra.mxu0 %v786
        %913 = vmatpush.msra.mxu0 %v785
        %914 = vmatpush.msra.mxu0 %v784
        %915 = vmatmul.f32.gmra.mxu0 %v888
        %v916 = vpop.f32.mrf.mxu0
        %v917 = vadd.f32 0.0, %v916
        %918 = vmatmul.f32.gmra.mxu0 %v891
        %v919 = vpop.f32.mrf.mxu0
        %v920 = vadd.f32 0.0, %v919
        %921 = vmatmul.f32.gmra.mxu0 %v894
        %v922 = vpop.f32.mrf.mxu0
        %v923 = vadd.f32 0.0, %v922
        %924 = vmatmul.f32.gmra.mxu0 %v897
        %v925 = vpop.f32.mrf.mxu0
        %v926 = vadd.f32 0.0, %v925
        %927 = vdwg.mxu0
        %v928 = vrot.slane %v923, 4
        %vm929 = vcmask 1047556
        %v930 = vsel %vm929, %v928, %v917
        %v931 = vrot.slane %v917, 4
        %v932 = vsel %vm929, %v923, %v931
        %v934 = vunpack.c.l.s4 1983009808
        %v935 = vunpack.c.0.s8 %v934
        %v936 = vperm.slane %v930, %v935
        %v938 = vunpack.c.l.s4 1983009808
        %v939 = vunpack.c.0.s8 %v938
        %v940 = vperm.slane %v932, %v939
        %v941 = vrot.slane %v926, 4
        %v942 = vsel %vm929, %v941, %v920
        %v943 = vrot.slane %v920, 4
        %v944 = vsel %vm929, %v926, %v943
        %v946 = vunpack.c.l.s4 1983009808
        %v947 = vunpack.c.0.s8 %v946
        %v948 = vperm.slane %v942, %v947
        %v950 = vunpack.c.l.s4 1983009808
        %v951 = vunpack.c.0.s8 %v950
        %v952 = vperm.slane %v944, %v951
        %v953 = vrot.slane %v948, 4
        %v954 = vsel %vm929, %v953, %v936
        %v955 = vrot.slane %v936, 4
        %v956 = vsel %vm929, %v948, %v955
        %v958 = vunpack.c.l.s4 1934713408
        %v959 = vunpack.c.0.s8 %v958
        %v960 = vperm.slane %v954, %v959
        %v962 = vunpack.c.l.s4 1934713408
        %v963 = vunpack.c.0.s8 %v962
        %v964 = vperm.slane %v956, %v963
        %v965 = vrot.slane %v952, 4
        %v966 = vsel %vm929, %v965, %v940
        %v967 = vrot.slane %v940, 4
        %v968 = vsel %vm929, %v952, %v967
        %v970 = vunpack.c.l.s4 1934713408
        %v971 = vunpack.c.0.s8 %v970
        %v972 = vperm.slane %v966, %v971
        %v974 = vunpack.c.l.s4 1934713408
        %v975 = vunpack.c.0.s8 %v974
        %v976 = vperm.slane %v968, %v975
        %v977 = vrot.slane %v960, 4
        %v978 = vsel %vm929, 0.0, %v977
        %v979 = vrot.slane %v964, 4
        %v980 = vsel %vm929, 0.0, %v979
        %v981 = vrot.slane %v972, 4
        %v982 = vsel %vm929, 0.0, %v981
        %v983 = vrot.slane %v976, 4
        %v984 = vsel %vm929, 0.0, %v983
        %v985 = vsel %vm929, %v979, %v960
        %v987 = vunpack.c.l.s4 1983009808
        %v988 = vunpack.c.0.s8 %v987
        %v989 = vperm.slane %v985, %v988
        %v990 = vrot.slane %v980, 4
        %v991 = vsel %vm929, %v990, %v978
        %v993 = vunpack.c.l.s4 1983009808
        %v994 = vunpack.c.0.s8 %v993
        %v995 = vperm.slane %v991, %v994
        %v996 = vsel %vm929, %v983, %v972
        %v998 = vunpack.c.l.s4 1983009808
        %v999 = vunpack.c.0.s8 %v998
        %v1000 = vperm.slane %v996, %v999
        %v1001 = vrot.slane %v984, 4
        %v1002 = vsel %vm929, %v1001, %v982
        %v1004 = vunpack.c.l.s4 1983009808
        %v1005 = vunpack.c.0.s8 %v1004
        %v1006 = vperm.slane %v1002, %v1005
        %v1007 = vrot.slane %v995, 4
        %v1008 = vsel %vm929, %v1007, %v989
        %v1009 = vrot.slane %v989, 4
        %v1010 = vsel %vm929, %v995, %v1009
        %v1012 = vunpack.c.l.s4 1934713408
        %v1013 = vunpack.c.0.s8 %v1012
        %v1014 = vperm.slane %v1008, %v1013
        %v1016 = vunpack.c.l.s4 1934713408
        %v1017 = vunpack.c.0.s8 %v1016
        %v1018 = vperm.slane %v1010, %v1017
        %v1019 = vrot.slane %v1006, 4
        %v1020 = vsel %vm929, %v1019, %v1000
        %v1021 = vrot.slane %v1000, 4
        %v1022 = vsel %vm929, %v1006, %v1021
        %v1024 = vunpack.c.l.s4 1934713408
        %v1025 = vunpack.c.0.s8 %v1024
        %v1026 = vperm.slane %v1020, %v1025
        %v1028 = vunpack.c.l.s4 1934713408
        %v1029 = vunpack.c.0.s8 %v1028
        %v1030 = vperm.slane %v1022, %v1029
        %v1031 = vrot.slane %v1026, 4
        %v1032 = vsel %vm929, %v1031, %v1014
        %v1033 = vrot.slane %v1014, 4
        %v1034 = vsel %vm929, %v1026, %v1033
        %v1035 = vrot.slane %v1030, 4
        %v1036 = vsel %vm929, %v1035, %v1018
        %v1037 = vrot.slane %v1018, 4
        %v1038 = vsel %vm929, %v1030, %v1037
        %1040 = vrot.lane.b32.xlu0 %v1034, 16
        %v1041 = vpop.permute.xlu0 %1040
        %1044 = vrot.lane.b32.xlu0 %v1036, 32
        %v1045 = vpop.permute.xlu0 %1044
        %1048 = vrot.lane.b32.xlu0 %v1038, 48
        %v1049 = vpop.permute.xlu0 %1048
        %v1051 = vsel %vm788, %v1032, %v1041
        %v1052 = vsel %vm842, %v1051, %v1045
        %vm1053 = vcmask 392192
        %v1054 = vsel %vm1053, %v1052, %v1049
        %v1055 = vld [vmem:[%s4] sm:$0xf]
        %v1056 = vld [vmem:[%s4 + $0x4] sm:$0xf]
        %v1057 = vpack.c.bf16 %v1054, %v1054
        %v1060 = vunpack.c.l.b16 %v1055
        %v1061 = vunpack.c.l.b16 %v1056
        %v1062 = vpack.c.b16 %v1061, %v1060
        %v1064 = vsel %vm559, %v1062, 0
        %v1067 = vsel %vm563, %v1057, 0
        %1069 = vmatpush.bf16.msra.mxu0 0
        %1070 = vmatpush.bf16.msra.mxu0 0
        %1071 = vmatpush.bf16.msra.mxu0 0
        %1072 = vmatpush.bf16.msra.mxu0 0
        %1073 = vmatpush.bf16.msra.mxu0 0
        %1074 = vmatpush.bf16.msra.mxu0 0
        %1075 = vmatpush.bf16.msra.mxu0 0
        %1076 = vmatpush.bf16.msra.mxu0 %v1067
        %1077 = vmatmul.bf16.gmra.mxu0 %v1064
        %v1078 = vpop.f32.mrf.mxu0
        %v1079 = vadd.f32 0.0, %v1078
        %v1080 = vpop.f32.mrf.mxu0
        %v1081 = vadd.f32 0.0, %v1080
        %1082 = vdwg.mxu0
        %v1085 = vrot.slane %v1079, 4
        %v1086 = vrot.slane %v1081, 4
        %v1089 = vadd.f32 %v661, %v1079
        %v1090 = vadd.f32 %v701, %v1085
        %v1091 = vadd.f32 %v741, %v1081
        %v1092 = vadd.f32 %v781, %v1086
        %v1093 = vld [vmem:[%s6] sm:$0xff]
        %v1094 = vld [vmem:[%s6 + $0x8] sm:$0xff]
        %1096 = vset.pattern.permute.xlu0 0
        %1097 = vperm.xlu0 %1096, %v1093
        %v1098 = vpop.permute.xlu0 %1097
        %1100 = vset.pattern.permute.xlu0 0
        %1101 = vperm.xlu0 %1100, %v1094
        %v1102 = vpop.permute.xlu0 %1101
        %v1104 = vunpack.c.l.s4 839922192
        %v1105 = vunpack.c.0.s8 %v1104
        %v1106 = vperm.slane %v1098, %v1105
        %v1108 = vunpack.c.l.s4 1985246804
        %v1109 = vunpack.c.0.s8 %v1108
        %v1110 = vperm.slane %v1098, %v1109
        %v1112 = vunpack.c.l.s4 839922192
        %v1113 = vunpack.c.0.s8 %v1112
        %v1114 = vperm.slane %v1102, %v1113
        %v1116 = vunpack.c.l.s4 1985246804
        %v1117 = vunpack.c.0.s8 %v1116
        %v1118 = vperm.slane %v1102, %v1117
        %v1123 = vmul.f32 %v1089, %v1106
        %v1124 = vmul.f32 %v1090, %v1110
        %v1125 = vmul.f32 %v1091, %v1114
        %v1126 = vmul.f32 %v1092, %v1118
        %v1127 = vld [vmem:[%s7] sm:$0xff]
        %v1128 = vld [vmem:[%s7 + $0x8] sm:$0xff]
        %1130 = vset.pattern.permute.xlu0 0
        %1131 = vperm.xlu0 %1130, %v1127
        %v1132 = vpop.permute.xlu0 %1131
        %1134 = vset.pattern.permute.xlu0 0
        %1135 = vperm.xlu0 %1134, %v1128
        %v1136 = vpop.permute.xlu0 %1135
        %v1138 = vunpack.c.l.s4 839922192
        %v1139 = vunpack.c.0.s8 %v1138
        %v1140 = vperm.slane %v1132, %v1139
        %v1142 = vunpack.c.l.s4 1985246804
        %v1143 = vunpack.c.0.s8 %v1142
        %v1144 = vperm.slane %v1132, %v1143
        %v1146 = vunpack.c.l.s4 839922192
        %v1147 = vunpack.c.0.s8 %v1146
        %v1148 = vperm.slane %v1136, %v1147
        %v1150 = vunpack.c.l.s4 1985246804
        %v1151 = vunpack.c.0.s8 %v1150
        %v1152 = vperm.slane %v1136, %v1151
        %v1157 = vadd.f32 %v1123, %v1140
        %v1158 = vadd.f32 %v1124, %v1144
        %v1159 = vadd.f32 %v1125, %v1148
        %v1160 = vadd.f32 %v1126, %v1152
        %1165 = vst [vmem:[#allocation1] ss:$2 sm:$0xff] %v1157
        %s1166 = scalar_lea.vmem [#allocation1], 1
        %1167 = vst [vmem:[%s1166] ss:$2 sm:$0xff] %v1158
        %s1168 = scalar_lea.vmem [#allocation1], 16
        %1169 = vst [vmem:[%s1168] ss:$2 sm:$0xff] %v1159
        %s1170 = scalar_lea.vmem [#allocation1], 17
        %1171 = vst [vmem:[%s1170] ss:$2 sm:$0xff] %v1160
        %v1172 = vld.sshfl [vmem:[#allocation1] sm:$0xff pattern:$0x75316420]
        %v1173 = vld.sshfl [vmem:[#allocation1 + $0x10] sm:$0xff pattern:$0x75316420]
        %v1176 = vpack.c.bf16 %v1173, %v1172
        %v1177 = vld [vmem:[%s8] sm:$0xf]
        %v1178 = vld [vmem:[%s8 + $0x4] sm:$0xf]
        %v1179 = vld [vmem:[%s8 + $0x8] sm:$0xf]
        %v1180 = vld [vmem:[%s8 + $0xc] sm:$0xf]
        %v1181 = vld [vmem:[%s8 + $0x10] sm:$0xf]
        %v1182 = vld [vmem:[%s8 + $0x14] sm:$0xf]
        %v1183 = vld [vmem:[%s8 + $0x18] sm:$0xf]
        %v1184 = vld [vmem:[%s8 + $0x1c] sm:$0xf]
        %v1193 = vunpack.c.l.b16 %v1177
        %v1194 = vunpack.c.l.b16 %v1178
        %v1195 = vunpack.c.l.b16 %v1179
        %v1196 = vunpack.c.l.b16 %v1180
        %v1197 = vunpack.c.l.b16 %v1181
        %v1198 = vunpack.c.l.b16 %v1182
        %v1199 = vunpack.c.l.b16 %v1183
        %v1200 = vunpack.c.l.b16 %v1184
        %v1201 = vpack.c.b16 %v1194, %v1193
        %v1202 = vpack.c.b16 %v1196, %v1195
        %v1203 = vpack.c.b16 %v1198, %v1197
        %v1204 = vpack.c.b16 %v1200, %v1199
        %v1210 = vsel %vm647, %v1176, 0
        %1212 = vmatpush.bf16.msra.mxu0 0
        %1213 = vmatpush.bf16.msra.mxu0 0
        %1214 = vmatpush.bf16.msra.mxu0 0
        %1215 = vmatpush.bf16.msra.mxu0 0
        %1216 = vmatpush.bf16.msra.mxu0 %v1204
        %1217 = vmatpush.bf16.msra.mxu0 %v1203
        %1218 = vmatpush.bf16.msra.mxu0 %v1202
        %1219 = vmatpush.bf16.msra.mxu0 %v1201
        %1220 = vmatmul.bf16.gmra.mxu0 %v1210
        %v1221 = vpop.f32.mrf.mxu0
        %v1222 = vadd.f32 0.0, %v1221
        %v1223 = vpop.f32.mrf.mxu0
        %v1224 = vadd.f32 0.0, %v1223
        %1225 = vdwg.mxu0
        %v1226 = vld [vmem:[%s9] sm:$0xf]
        %v1227 = vld [vmem:[%s9 + $0x4] sm:$0xf]
        %v1228 = vld [vmem:[%s9 + $0x8] sm:$0xf]
        %v1229 = vld [vmem:[%s9 + $0xc] sm:$0xf]
        %v1230 = vld [vmem:[%s9 + $0x10] sm:$0xf]
        %v1231 = vld [vmem:[%s9 + $0x14] sm:$0xf]
        %v1232 = vpack.c.bf16 %v1224, %v1222
        %v1239 = vunpack.c.l.b16 %v1226
        %v1240 = vunpack.c.l.b16 %v1227
        %v1241 = vunpack.c.l.b16 %v1228
        %v1242 = vunpack.c.l.b16 %v1229
        %v1243 = vunpack.c.l.b16 %v1230
        %v1244 = vunpack.c.l.b16 %v1231
        %v1245 = vpack.c.b16 %v1240, %v1239
        %v1246 = vpack.c.b16 %v1242, %v1241
        %v1247 = vpack.c.b16 %v1244, %v1243
        %v1249 = vsel %vm788, %v1245, 0
        %v1252 = vsel %vm788, %v1246, 0
        %v1255 = vsel %vm788, %v1247, 0
        %1257 = vmatpush.bf16.msra.mxu0 0
        %1258 = vmatpush.bf16.msra.mxu0 0
        %1259 = vmatpush.bf16.msra.mxu0 0
        %1260 = vmatpush.bf16.msra.mxu0 0
        %1261 = vmatpush.bf16.msra.mxu0 0
        %1262 = vmatpush.bf16.msra.mxu0 0
        %1263 = vmatpush.bf16.msra.mxu0 0
        %1264 = vmatpush.bf16.msra.mxu0 %v1232
        %1265 = vmatmul.bf16.gmra.mxu0 %v1249
        %v1266 = vpop.f32.mrf.mxu0
        %v1267 = vadd.f32 0.0, %v1266
        %v1268 = vpop.f32.mrf.mxu0
        %v1269 = vadd.f32 0.0, %v1268
        %1270 = vmatmul.bf16.gmra.mxu0 %v1252
        %v1271 = vpop.f32.mrf.mxu0
        %v1272 = vadd.f32 0.0, %v1271
        %v1273 = vpop.f32.mrf.mxu0
        %v1274 = vadd.f32 0.0, %v1273
        %1275 = vmatmul.bf16.gmra.mxu0 %v1255
        %v1276 = vpop.f32.mrf.mxu0
        %v1277 = vadd.f32 0.0, %v1276
        %v1278 = vpop.f32.mrf.mxu0
        %v1279 = vadd.f32 0.0, %v1278
        %1280 = vdwg.mxu0
        %v1283 = vrot.slane %v1267, 4
        %v1284 = vrot.slane %v1269, 4
        %v1289 = vrot.slane %v1272, 4
        %v1290 = vrot.slane %v1274, 4
        %v1293 = vrot.slane %v1277, 4
        %v1294 = vrot.slane %v1279, 4
        %1295 = vxpose.xlu0.b32.start [1/16] %v1267, 128
        %1296 = vxpose.xlu0.b32.cont [2/16] 0.0, 128
        %1297 = vxpose.xlu0.b32.cont [3/16] 0.0, 128
        %1298 = vxpose.xlu0.b32.cont [4/16] 0.0, 128
        %1299 = vxpose.xlu0.b32.cont [5/16] 0.0, 128
        %1300 = vxpose.xlu0.b32.cont [6/16] 0.0, 128
        %1301 = vxpose.xlu0.b32.cont [7/16] 0.0, 128
        %1302 = vxpose.xlu0.b32.cont [8/16] 0.0, 128
        %1303 = vxpose.xlu0.b32.cont [9/16] 0.0, 128
        %1304 = vxpose.xlu0.b32.cont [10/16] 0.0, 128
        %1305 = vxpose.xlu0.b32.cont [11/16] 0.0, 128
        %1306 = vxpose.xlu0.b32.cont [12/16] 0.0, 128
        %1307 = vxpose.xlu0.b32.cont [13/16] 0.0, 128
        %1308 = vxpose.xlu0.b32.cont [14/16] 0.0, 128
        %1309 = vxpose.xlu0.b32.cont [15/16] 0.0, 128
        %1310 = vxpose.xlu0.b32.end [16/16] 0.0, 128
        %v1311 = vpop.trf.xlu0
        %v1312 = vpop.trf.xlu0
        %v1313 = vpop.trf.xlu0
        %v1314 = vpop.trf.xlu0
        %v1315 = vpop.trf.xlu0
        %v1316 = vpop.trf.xlu0
        %v1317 = vpop.trf.xlu0
        %v1318 = vpop.trf.xlu0
        %v1319 = vpop.trf.xlu0
        %v1320 = vpop.trf.xlu0
        %v1321 = vpop.trf.xlu0
        %v1322 = vpop.trf.xlu0
        %v1323 = vpop.trf.xlu0
        %v1324 = vpop.trf.xlu0
        %v1325 = vpop.trf.xlu0
        %v1326 = vpop.trf.xlu0
        %vm1327 = vcmask 31744
        %v1329 = vsel %vm1327, %v1311, 0
        %v1332 = vsel %vm1327, %v1312, 0
        %v1334 = vsel %vm563, %v1272, 0
        %1336 = vmatpush.msra.mxu0 0.0
        %1337 = vmatpush.msra.mxu0 0.0
        %1338 = vmatpush.msra.mxu0 0.0
        %1339 = vmatpush.msra.mxu0 0.0
        %1340 = vmatpush.msra.mxu0 0.0
        %1341 = vmatpush.msra.mxu0 0.0
        %1342 = vmatpush.msra.mxu0 0.0
        %1343 = vmatpush.msra.mxu0 0.0
        %1344 = vmatpush.msra.mxu0 0.0
        %1345 = vmatpush.msra.mxu0 0.0
        %1346 = vmatpush.msra.mxu0 0.0
        %1347 = vmatpush.msra.mxu0 0.0
        %1348 = vmatpush.msra.mxu0 0.0
        %1349 = vmatpush.msra.mxu0 0.0
        %1350 = vmatpush.msra.mxu0 0.0
        %1351 = vmatpush.msra.mxu0 %v1334
        %1352 = vmatmul.f32.gmra.mxu0 %v1329
        %v1353 = vpop.f32.mrf.mxu0
        %v1354 = vadd.f32 0.0, %v1353
        %1355 = vmatmul.f32.gmra.mxu0 %v1332
        %v1356 = vpop.f32.mrf.mxu0
        %v1357 = vadd.f32 0.0, %v1356
        %1358 = vdwg.mxu0
        %1359 = vxpose.xlu0.b32.start [1/16] %v1283, 128
        %1360 = vxpose.xlu0.b32.cont [2/16] 0.0, 128
        %1361 = vxpose.xlu0.b32.cont [3/16] 0.0, 128
        %1362 = vxpose.xlu0.b32.cont [4/16] 0.0, 128
        %1363 = vxpose.xlu0.b32.cont [5/16] 0.0, 128
        %1364 = vxpose.xlu0.b32.cont [6/16] 0.0, 128
        %1365 = vxpose.xlu0.b32.cont [7/16] 0.0, 128
        %1366 = vxpose.xlu0.b32.cont [8/16] 0.0, 128
        %1367 = vxpose.xlu0.b32.cont [9/16] 0.0, 128
        %1368 = vxpose.xlu0.b32.cont [10/16] 0.0, 128
        %1369 = vxpose.xlu0.b32.cont [11/16] 0.0, 128
        %1370 = vxpose.xlu0.b32.cont [12/16] 0.0, 128
        %1371 = vxpose.xlu0.b32.cont [13/16] 0.0, 128
        %1372 = vxpose.xlu0.b32.cont [14/16] 0.0, 128
        %1373 = vxpose.xlu0.b32.cont [15/16] 0.0, 128
        %1374 = vxpose.xlu0.b32.end [16/16] 0.0, 128
        %v1375 = vpop.trf.xlu0
        %v1376 = vpop.trf.xlu0
        %v1377 = vpop.trf.xlu0
        %v1378 = vpop.trf.xlu0
        %v1379 = vpop.trf.xlu0
        %v1380 = vpop.trf.xlu0
        %v1381 = vpop.trf.xlu0
        %v1382 = vpop.trf.xlu0
        %v1383 = vpop.trf.xlu0
        %v1384 = vpop.trf.xlu0
        %v1385 = vpop.trf.xlu0
        %v1386 = vpop.trf.xlu0
        %v1387 = vpop.trf.xlu0
        %v1388 = vpop.trf.xlu0
        %v1389 = vpop.trf.xlu0
        %v1390 = vpop.trf.xlu0
        %v1392 = vsel %vm1327, %v1375, 0
        %v1395 = vsel %vm1327, %v1376, 0
        %v1397 = vsel %vm563, %v1289, 0
        %1399 = vmatpush.msra.mxu0 0.0
        %1400 = vmatpush.msra.mxu0 0.0
        %1401 = vmatpush.msra.mxu0 0.0
        %1402 = vmatpush.msra.mxu0 0.0
        %1403 = vmatpush.msra.mxu0 0.0
        %1404 = vmatpush.msra.mxu0 0.0
        %1405 = vmatpush.msra.mxu0 0.0
        %1406 = vmatpush.msra.mxu0 0.0
        %1407 = vmatpush.msra.mxu0 0.0
        %1408 = vmatpush.msra.mxu0 0.0
        %1409 = vmatpush.msra.mxu0 0.0
        %1410 = vmatpush.msra.mxu0 0.0
        %1411 = vmatpush.msra.mxu0 0.0
        %1412 = vmatpush.msra.mxu0 0.0
        %1413 = vmatpush.msra.mxu0 0.0
        %1414 = vmatpush.msra.mxu0 %v1397
        %1415 = vmatmul.f32.gmra.mxu0 %v1392
        %v1416 = vpop.f32.mrf.mxu0
        %v1417 = vadd.f32 0.0, %v1416
        %1418 = vmatmul.f32.gmra.mxu0 %v1395
        %v1419 = vpop.f32.mrf.mxu0
        %v1420 = vadd.f32 0.0, %v1419
        %1421 = vdwg.mxu0
        %1422 = vxpose.xlu0.b32.start [1/16] %v1269, 128
        %1423 = vxpose.xlu0.b32.cont [2/16] 0.0, 128
        %1424 = vxpose.xlu0.b32.cont [3/16] 0.0, 128
        %1425 = vxpose.xlu0.b32.cont [4/16] 0.0, 128
        %1426 = vxpose.xlu0.b32.cont [5/16] 0.0, 128
        %1427 = vxpose.xlu0.b32.cont [6/16] 0.0, 128
        %1428 = vxpose.xlu0.b32.cont [7/16] 0.0, 128
        %1429 = vxpose.xlu0.b32.cont [8/16] 0.0, 128
        %1430 = vxpose.xlu0.b32.cont [9/16] 0.0, 128
        %1431 = vxpose.xlu0.b32.cont [10/16] 0.0, 128
        %1432 = vxpose.xlu0.b32.cont [11/16] 0.0, 128
        %1433 = vxpose.xlu0.b32.cont [12/16] 0.0, 128
        %1434 = vxpose.xlu0.b32.cont [13/16] 0.0, 128
        %1435 = vxpose.xlu0.b32.cont [14/16] 0.0, 128
        %1436 = vxpose.xlu0.b32.cont [15/16] 0.0, 128
        %1437 = vxpose.xlu0.b32.end [16/16] 0.0, 128
        %v1438 = vpop.trf.xlu0
        %v1439 = vpop.trf.xlu0
        %v1440 = vpop.trf.xlu0
        %v1441 = vpop.trf.xlu0
        %v1442 = vpop.trf.xlu0
        %v1443 = vpop.trf.xlu0
        %v1444 = vpop.trf.xlu0
        %v1445 = vpop.trf.xlu0
        %v1446 = vpop.trf.xlu0
        %v1447 = vpop.trf.xlu0
        %v1448 = vpop.trf.xlu0
        %v1449 = vpop.trf.xlu0
        %v1450 = vpop.trf.xlu0
        %v1451 = vpop.trf.xlu0
        %v1452 = vpop.trf.xlu0
        %v1453 = vpop.trf.xlu0
        %v1455 = vsel %vm1327, %v1438, 0
        %v1458 = vsel %vm1327, %v1439, 0
        %v1460 = vsel %vm563, %v1274, 0
        %1462 = vmatpush.msra.mxu0 0.0
        %1463 = vmatpush.msra.mxu0 0.0
        %1464 = vmatpush.msra.mxu0 0.0
        %1465 = vmatpush.msra.mxu0 0.0
        %1466 = vmatpush.msra.mxu0 0.0
        %1467 = vmatpush.msra.mxu0 0.0
        %1468 = vmatpush.msra.mxu0 0.0
        %1469 = vmatpush.msra.mxu0 0.0
        %1470 = vmatpush.msra.mxu0 0.0
        %1471 = vmatpush.msra.mxu0 0.0
        %1472 = vmatpush.msra.mxu0 0.0
        %1473 = vmatpush.msra.mxu0 0.0
        %1474 = vmatpush.msra.mxu0 0.0
        %1475 = vmatpush.msra.mxu0 0.0
        %1476 = vmatpush.msra.mxu0 0.0
        %1477 = vmatpush.msra.mxu0 %v1460
        %1478 = vmatmul.f32.gmra.mxu0 %v1455
        %v1479 = vpop.f32.mrf.mxu0
        %v1480 = vadd.f32 0.0, %v1479
        %1481 = vmatmul.f32.gmra.mxu0 %v1458
        %v1482 = vpop.f32.mrf.mxu0
        %v1483 = vadd.f32 0.0, %v1482
        %1484 = vdwg.mxu0
        %1485 = vxpose.xlu0.b32.start [1/16] %v1284, 128
        %1486 = vxpose.xlu0.b32.cont [2/16] 0.0, 128
        %1487 = vxpose.xlu0.b32.cont [3/16] 0.0, 128
        %1488 = vxpose.xlu0.b32.cont [4/16] 0.0, 128
        %1489 = vxpose.xlu0.b32.cont [5/16] 0.0, 128
        %1490 = vxpose.xlu0.b32.cont [6/16] 0.0, 128
        %1491 = vxpose.xlu0.b32.cont [7/16] 0.0, 128
        %1492 = vxpose.xlu0.b32.cont [8/16] 0.0, 128
        %1493 = vxpose.xlu0.b32.cont [9/16] 0.0, 128
        %1494 = vxpose.xlu0.b32.cont [10/16] 0.0, 128
        %1495 = vxpose.xlu0.b32.cont [11/16] 0.0, 128
        %1496 = vxpose.xlu0.b32.cont [12/16] 0.0, 128
        %1497 = vxpose.xlu0.b32.cont [13/16] 0.0, 128
        %1498 = vxpose.xlu0.b32.cont [14/16] 0.0, 128
        %1499 = vxpose.xlu0.b32.cont [15/16] 0.0, 128
        %1500 = vxpose.xlu0.b32.end [16/16] 0.0, 128
        %v1501 = vpop.trf.xlu0
        %v1502 = vpop.trf.xlu0
        %v1503 = vpop.trf.xlu0
        %v1504 = vpop.trf.xlu0
        %v1505 = vpop.trf.xlu0
        %v1506 = vpop.trf.xlu0
        %v1507 = vpop.trf.xlu0
        %v1508 = vpop.trf.xlu0
        %v1509 = vpop.trf.xlu0
        %v1510 = vpop.trf.xlu0
        %v1511 = vpop.trf.xlu0
        %v1512 = vpop.trf.xlu0
        %v1513 = vpop.trf.xlu0
        %v1514 = vpop.trf.xlu0
        %v1515 = vpop.trf.xlu0
        %v1516 = vpop.trf.xlu0
        %v1518 = vsel %vm1327, %v1501, 0
        %v1521 = vsel %vm1327, %v1502, 0
        %v1523 = vsel %vm563, %v1290, 0
        %1525 = vmatpush.msra.mxu0 0.0
        %1526 = vmatpush.msra.mxu0 0.0
        %1527 = vmatpush.msra.mxu0 0.0
        %1528 = vmatpush.msra.mxu0 0.0
        %1529 = vmatpush.msra.mxu0 0.0
        %1530 = vmatpush.msra.mxu0 0.0
        %1531 = vmatpush.msra.mxu0 0.0
        %1532 = vmatpush.msra.mxu0 0.0
        %1533 = vmatpush.msra.mxu0 0.0
        %1534 = vmatpush.msra.mxu0 0.0
        %1535 = vmatpush.msra.mxu0 0.0
        %1536 = vmatpush.msra.mxu0 0.0
        %1537 = vmatpush.msra.mxu0 0.0
        %1538 = vmatpush.msra.mxu0 0.0
        %1539 = vmatpush.msra.mxu0 0.0
        %1540 = vmatpush.msra.mxu0 %v1523
        %1541 = vmatmul.f32.gmra.mxu0 %v1518
        %v1542 = vpop.f32.mrf.mxu0
        %v1543 = vadd.f32 0.0, %v1542
        %1544 = vmatmul.f32.gmra.mxu0 %v1521
        %v1545 = vpop.f32.mrf.mxu0
        %v1546 = vadd.f32 0.0, %v1545
        %1547 = vdwg.mxu0
        %v1548 = vmul.f32 %v1354, 0.5
        %v1549 = vmul.f32 %v1357, 0.5
        %v1550 = vmul.f32 %v1417, 0.5
        %v1551 = vmul.f32 %v1420, 0.5
        %v1552 = vmul.f32 %v1480, 0.5
        %v1553 = vmul.f32 %v1483, 0.5
        %v1554 = vmul.f32 %v1543, 0.5
        %v1555 = vmul.f32 %v1546, 0.5
        %v1556 = vld [vmem:[%s10] sm:$0xff]
        %v1557 = vld [vmem:[%s10 + $0x8] sm:$0xff]
        %v1558 = vadd.f32 %v1548, %v1556
        %v1559 = vadd.f32 %v1549, %v1557
        %v1560 = vadd.f32 %v1550, %v1556
        %v1561 = vadd.f32 %v1551, %v1557
        %v1562 = vadd.f32 %v1552, %v1556
        %v1563 = vadd.f32 %v1553, %v1557
        %v1564 = vadd.f32 %v1554, %v1556
        %v1565 = vadd.f32 %v1555, %v1557
        %v1566 = vsel %vm788, %v1558, -inf
        %1567 = vmax.xlane.f32.xlu0 %v1566
        %v1568 = vpop.xlane.xlu0 %1567
        %v1569 = vsel %vm788, %v1559, -inf
        %1570 = vmax.xlane.f32.xlu0 %v1569
        %v1571 = vpop.xlane.xlu0 %1570
        %v1572 = vsel %vm788, %v1560, -inf
        %1573 = vmax.xlane.f32.xlu0 %v1572
        %v1574 = vpop.xlane.xlu0 %1573
        %v1575 = vsel %vm788, %v1561, -inf
        %1576 = vmax.xlane.f32.xlu0 %v1575
        %v1577 = vpop.xlane.xlu0 %1576
        %v1578 = vsel %vm788, %v1562, -inf
        %1579 = vmax.xlane.f32.xlu0 %v1578
        %v1580 = vpop.xlane.xlu0 %1579
        %v1581 = vsel %vm788, %v1563, -inf
        %1582 = vmax.xlane.f32.xlu0 %v1581
        %v1583 = vpop.xlane.xlu0 %1582
        %v1584 = vsel %vm788, %v1564, -inf
        %1585 = vmax.xlane.f32.xlu0 %v1584
        %v1586 = vpop.xlane.xlu0 %1585
        %v1587 = vsel %vm788, %v1565, -inf
        %1588 = vmax.xlane.f32.xlu0 %v1587
        %v1589 = vpop.xlane.xlu0 %1588
        %v1590 = vsub.f32 %v1558, %v1568
        %v1591 = vsub.f32 %v1559, %v1571
        %v1592 = vsub.f32 %v1560, %v1574
        %v1593 = vsub.f32 %v1561, %v1577
        %v1594 = vsub.f32 %v1562, %v1580
        %v1595 = vsub.f32 %v1563, %v1583
        %v1596 = vsub.f32 %v1564, %v1586
        %v1597 = vsub.f32 %v1565, %v1589
        %v1598 = vmul.f32 %v1590, 1.442695
        %v1599 = vpow.pop %v1598
        %v1600 = vmul.f32 %v1591, 1.442695
        %v1601 = vpow.pop %v1600
        %v1602 = vmul.f32 %v1592, 1.442695
        %v1603 = vpow.pop %v1602
        %v1604 = vmul.f32 %v1593, 1.442695
        %v1605 = vpow.pop %v1604
        %v1606 = vmul.f32 %v1594, 1.442695
        %v1607 = vpow.pop %v1606
        %v1608 = vmul.f32 %v1595, 1.442695
        %v1609 = vpow.pop %v1608
        %v1610 = vmul.f32 %v1596, 1.442695
        %v1611 = vpow.pop %v1610
        %v1612 = vmul.f32 %v1597, 1.442695
        %v1613 = vpow.pop %v1612
        %v1614 = vsel %vm788, %v1599, 0.0
        %1615 = vadd.xlane.f32.xlu0 %v1614
        %v1616 = vpop.xlane.xlu0 %1615
        %v1617 = vsel %vm788, %v1601, 0.0
        %1618 = vadd.xlane.f32.xlu0 %v1617
        %v1619 = vpop.xlane.xlu0 %1618
        %v1620 = vsel %vm788, %v1603, 0.0
        %1621 = vadd.xlane.f32.xlu0 %v1620
        %v1622 = vpop.xlane.xlu0 %1621
        %v1623 = vsel %vm788, %v1605, 0.0
        %1624 = vadd.xlane.f32.xlu0 %v1623
        %v1625 = vpop.xlane.xlu0 %1624
        %v1626 = vsel %vm788, %v1607, 0.0
        %1627 = vadd.xlane.f32.xlu0 %v1626
        %v1628 = vpop.xlane.xlu0 %1627
        %v1629 = vsel %vm788, %v1609, 0.0
        %1630 = vadd.xlane.f32.xlu0 %v1629
        %v1631 = vpop.xlane.xlu0 %1630
        %v1632 = vsel %vm788, %v1611, 0.0
        %1633 = vadd.xlane.f32.xlu0 %v1632
        %v1634 = vpop.xlane.xlu0 %1633
        %v1635 = vsel %vm788, %v1613, 0.0
        %1636 = vadd.xlane.f32.xlu0 %v1635
        %v1637 = vpop.xlane.xlu0 %1636
        %v1638 = vrcp.pop %v1616
        %v1639 = vrcp.pop %v1619
        %v1640 = vrcp.pop %v1622
        %v1641 = vrcp.pop %v1625
        %v1642 = vrcp.pop %v1628
        %v1643 = vrcp.pop %v1631
        %v1644 = vrcp.pop %v1634
        %v1645 = vrcp.pop %v1637
        %v1646 = vmul.f32 %v1599, %v1638
        %v1647 = vmul.f32 %v1601, %v1639
        %v1648 = vmul.f32 %v1603, %v1640
        %v1649 = vmul.f32 %v1605, %v1641
        %v1650 = vmul.f32 %v1607, %v1642
        %v1651 = vmul.f32 %v1609, %v1643
        %v1652 = vmul.f32 %v1611, %v1644
        %v1653 = vmul.f32 %v1613, %v1645
        %v1654 = vsel %vm788, %v1277, 0
        %v1657 = vsel %vm788, %v1646, 0
        %v1660 = vsel %vm788, %v1647, 0
        %1662 = vmatpush.xpose.msra.mxu0 0.0
        %1663 = vmatpush.xpose.msra.mxu0 0.0
        %1664 = vmatpush.xpose.msra.mxu0 0.0
        %1665 = vmatpush.xpose.msra.mxu0 0.0
        %1666 = vmatpush.xpose.msra.mxu0 0.0
        %1667 = vmatpush.xpose.msra.mxu0 0.0
        %1668 = vmatpush.xpose.msra.mxu0 0.0
        %1669 = vmatpush.xpose.msra.mxu0 0.0
        %1670 = vmatpush.xpose.msra.mxu0 0.0
        %1671 = vmatpush.xpose.msra.mxu0 0.0
        %1672 = vmatpush.xpose.msra.mxu0 0.0
        %1673 = vmatpush.xpose.msra.mxu0 0.0
        %1674 = vmatpush.xpose.msra.mxu0 0.0
        %1675 = vmatpush.xpose.msra.mxu0 0.0
        %1676 = vmatpush.xpose.msra.mxu0 %v1660
        %1677 = vmatpush.xpose.msra.mxu0 %v1657
        %1678 = vmatmul.f32.gmra.mxu0 %v1654
        %v1679 = vpop.f32.mrf.mxu0
        %v1680 = vadd.f32 0.0, %v1679
        %1681 = vdwg.mxu0
        %v1682 = vsel %vm788, %v1293, 0
        %v1685 = vsel %vm788, %v1648, 0
        %v1688 = vsel %vm788, %v1649, 0
        %1690 = vmatpush.xpose.msra.mxu0 0.0
        %1691 = vmatpush.xpose.msra.mxu0 0.0
        %1692 = vmatpush.xpose.msra.mxu0 0.0
        %1693 = vmatpush.xpose.msra.mxu0 0.0
        %1694 = vmatpush.xpose.msra.mxu0 0.0
        %1695 = vmatpush.xpose.msra.mxu0 0.0
        %1696 = vmatpush.xpose.msra.mxu0 0.0
        %1697 = vmatpush.xpose.msra.mxu0 0.0
        %1698 = vmatpush.xpose.msra.mxu0 0.0
        %1699 = vmatpush.xpose.msra.mxu0 0.0
        %1700 = vmatpush.xpose.msra.mxu0 0.0
        %1701 = vmatpush.xpose.msra.mxu0 0.0
        %1702 = vmatpush.xpose.msra.mxu0 0.0
        %1703 = vmatpush.xpose.msra.mxu0 0.0
        %1704 = vmatpush.xpose.msra.mxu0 %v1688
        %1705 = vmatpush.xpose.msra.mxu0 %v1685
        %1706 = vmatmul.f32.gmra.mxu0 %v1682
        %v1707 = vpop.f32.mrf.mxu0
        %v1708 = vadd.f32 0.0, %v1707
        %1709 = vdwg.mxu0
        %v1710 = vsel %vm788, %v1279, 0
        %v1713 = vsel %vm788, %v1650, 0
        %v1716 = vsel %vm788, %v1651, 0
        %1718 = vmatpush.xpose.msra.mxu0 0.0
        %1719 = vmatpush.xpose.msra.mxu0 0.0
        %1720 = vmatpush.xpose.msra.mxu0 0.0
        %1721 = vmatpush.xpose.msra.mxu0 0.0
        %1722 = vmatpush.xpose.msra.mxu0 0.0
        %1723 = vmatpush.xpose.msra.mxu0 0.0
        %1724 = vmatpush.xpose.msra.mxu0 0.0
        %1725 = vmatpush.xpose.msra.mxu0 0.0
        %1726 = vmatpush.xpose.msra.mxu0 0.0
        %1727 = vmatpush.xpose.msra.mxu0 0.0
        %1728 = vmatpush.xpose.msra.mxu0 0.0
        %1729 = vmatpush.xpose.msra.mxu0 0.0
        %1730 = vmatpush.xpose.msra.mxu0 0.0
        %1731 = vmatpush.xpose.msra.mxu0 0.0
        %1732 = vmatpush.xpose.msra.mxu0 %v1716
        %1733 = vmatpush.xpose.msra.mxu0 %v1713
        %1734 = vmatmul.f32.gmra.mxu0 %v1710
        %v1735 = vpop.f32.mrf.mxu0
        %v1736 = vadd.f32 0.0, %v1735
        %1737 = vdwg.mxu0
        %v1738 = vsel %vm788, %v1294, 0
        %v1741 = vsel %vm788, %v1652, 0
        %v1744 = vsel %vm788, %v1653, 0
        %1746 = vmatpush.xpose.msra.mxu0 0.0
        %1747 = vmatpush.xpose.msra.mxu0 0.0
        %1748 = vmatpush.xpose.msra.mxu0 0.0
        %1749 = vmatpush.xpose.msra.mxu0 0.0
        %1750 = vmatpush.xpose.msra.mxu0 0.0
        %1751 = vmatpush.xpose.msra.mxu0 0.0
        %1752 = vmatpush.xpose.msra.mxu0 0.0
        %1753 = vmatpush.xpose.msra.mxu0 0.0
        %1754 = vmatpush.xpose.msra.mxu0 0.0
        %1755 = vmatpush.xpose.msra.mxu0 0.0
        %1756 = vmatpush.xpose.msra.mxu0 0.0
        %1757 = vmatpush.xpose.msra.mxu0 0.0
        %1758 = vmatpush.xpose.msra.mxu0 0.0
        %1759 = vmatpush.xpose.msra.mxu0 0.0
        %1760 = vmatpush.xpose.msra.mxu0 %v1744
        %1761 = vmatpush.xpose.msra.mxu0 %v1741
        %1762 = vmatmul.f32.gmra.mxu0 %v1738
        %v1763 = vpop.f32.mrf.mxu0
        %v1764 = vadd.f32 0.0, %v1763
        %1765 = vdwg.mxu0
        %v1766 = vld [vmem:[%s11] sm:$0xf]
        %v1767 = vld [vmem:[%s11 + $0x4] sm:$0xf]
        %1772 = vst [vmem:[#allocation1] ss:$2 sm:$0xff] %v1680
        %s1773 = scalar_lea.vmem [#allocation1], 1
        %1774 = vst [vmem:[%s1773] ss:$2 sm:$0xff] %v1708
        %s1775 = scalar_lea.vmem [#allocation1], 16
        %1776 = vst [vmem:[%s1775] ss:$2 sm:$0xff] %v1736
        %s1777 = scalar_lea.vmem [#allocation1], 17
        %1778 = vst [vmem:[%s1777] ss:$2 sm:$0xff] %v1764
        %v1779 = vld.sshfl [vmem:[#allocation1] sm:$0xff pattern:$0x75316420]
        %v1780 = vld.sshfl [vmem:[#allocation1 + $0x10] sm:$0xff pattern:$0x75316420]
        %v1783 = vpack.c.bf16 %v1780, %v1779
        %v1786 = vunpack.c.l.b16 %v1766
        %v1787 = vunpack.c.l.b16 %v1767
        %v1788 = vpack.c.b16 %v1787, %v1786
        %v1790 = vsel %vm788, %v1788, 0
        %1792 = vmatpush.bf16.msra.mxu0 0
        %1793 = vmatpush.bf16.msra.mxu0 0
        %1794 = vmatpush.bf16.msra.mxu0 0
        %1795 = vmatpush.bf16.msra.mxu0 0
        %1796 = vmatpush.bf16.msra.mxu0 0
        %1797 = vmatpush.bf16.msra.mxu0 0
        %1798 = vmatpush.bf16.msra.mxu0 0
        %1799 = vmatpush.bf16.msra.mxu0 %v1783
        %1800 = vmatmul.bf16.gmra.mxu0 %v1790
        %v1801 = vpop.f32.mrf.mxu0
        %v1802 = vadd.f32 %v1222, %v1801
        %v1803 = vpop.f32.mrf.mxu0
        %v1804 = vadd.f32 %v1224, %v1803
        %1805 = vdwg.mxu0
        %v1806 = vpack.c.bf16 %v1804, %v1802
        %v1807 = vld [vmem:[%s12] sm:$0xf]
        %v1808 = vld [vmem:[%s12 + $0x4] sm:$0xf]
        %v1811 = vunpack.c.l.b16 %v1807
        %v1812 = vunpack.c.l.b16 %v1808
        %v1813 = vpack.c.b16 %v1812, %v1811
        %v1816 = vsel %vm788, %v1806, 0
        %1818 = vmatpush.bf16.msra.mxu0 0
        %1819 = vmatpush.bf16.msra.mxu0 0
        %1820 = vmatpush.bf16.msra.mxu0 0
        %1821 = vmatpush.bf16.msra.mxu0 0
        %1822 = vmatpush.bf16.msra.mxu0 0
        %1823 = vmatpush.bf16.msra.mxu0 0
        %1824 = vmatpush.bf16.msra.mxu0 0
        %1825 = vmatpush.bf16.msra.mxu0 %v1813
        %1826 = vmatmul.bf16.gmra.mxu0 %v1816
        %v1827 = vpop.f32.mrf.mxu0
        %v1828 = vadd.f32 0.0, %v1827
        %v1829 = vpop.f32.mrf.mxu0
        %v1830 = vadd.f32 0.0, %v1829
        %1831 = vdwg.mxu0
        %vm1832 = vcmask 15360
        %1833 = vst.msk [vmem:[%s548] sm:$0xff] %vm1832, %v1828
        %1834 = vst.msk [vmem:[%s548 + $0x8] sm:$0xff] %vm1832, %v1830
        %v1835 = vld [vmem:[%s14] sm:$0x1]
        %v1836 = vld [vmem:[%s13] sm:$0xff]
        %v1837 = vld [vmem:[%s13 + $0x8] sm:$0xff]
        %1838 = vxpose.xlu0.b32.start [1/16] %v1828, 128
        %1839 = vxpose.xlu0.b32.cont [2/16] %v1830, 128
        %1840 = vxpose.xlu0.b32.cont [3/16] 0.0, 128
        %1841 = vxpose.xlu0.b32.cont [4/16] 0.0, 128
        %1842 = vxpose.xlu0.b32.cont [5/16] 0.0, 128
        %1843 = vxpose.xlu0.b32.cont [6/16] 0.0, 128
        %1844 = vxpose.xlu0.b32.cont [7/16] 0.0, 128
        %1845 = vxpose.xlu0.b32.cont [8/16] 0.0, 128
        %1846 = vxpose.xlu0.b32.cont [9/16] 0.0, 128
        %1847 = vxpose.xlu0.b32.cont [10/16] 0.0, 128
        %1848 = vxpose.xlu0.b32.cont [11/16] 0.0, 128
        %1849 = vxpose.xlu0.b32.cont [12/16] 0.0, 128
        %1850 = vxpose.xlu0.b32.cont [13/16] 0.0, 128
        %1851 = vxpose.xlu0.b32.cont [14/16] 0.0, 128
        %1852 = vxpose.xlu0.b32.cont [15/16] 0.0, 128
        %1853 = vxpose.xlu0.b32.end [16/16] 0.0, 128
        %v1854 = vpop.trf.xlu0
        %v1855 = vpop.trf.xlu0
        %v1856 = vpop.trf.xlu0
        %v1857 = vpop.trf.xlu0
        %v1858 = vpop.trf.xlu0
        %v1859 = vpop.trf.xlu0
        %v1860 = vpop.trf.xlu0
        %v1861 = vpop.trf.xlu0
        %v1862 = vpop.trf.xlu0
        %v1863 = vpop.trf.xlu0
        %v1864 = vpop.trf.xlu0
        %v1865 = vpop.trf.xlu0
        %v1866 = vpop.trf.xlu0
        %v1867 = vpop.trf.xlu0
        %v1868 = vpop.trf.xlu0
        %v1869 = vpop.trf.xlu0
        %v1871 = vsel %vm788, %v1854, 0
        %1873 = vmatpush.msra.mxu0 0.0
        %1874 = vmatpush.msra.mxu0 0.0
        %1875 = vmatpush.msra.mxu0 0.0
        %1876 = vmatpush.msra.mxu0 0.0
        %1877 = vmatpush.msra.mxu0 0.0
        %1878 = vmatpush.msra.mxu0 0.0
        %1879 = vmatpush.msra.mxu0 0.0
        %1880 = vmatpush.msra.mxu0 0.0
        %1881 = vmatpush.msra.mxu0 0.0
        %1882 = vmatpush.msra.mxu0 0.0
        %1883 = vmatpush.msra.mxu0 0.0
        %1884 = vmatpush.msra.mxu0 0.0
        %1885 = vmatpush.msra.mxu0 0.0
        %1886 = vmatpush.msra.mxu0 0.0
        %1887 = vmatpush.msra.mxu0 %v1837
        %1888 = vmatpush.msra.mxu0 %v1836
        %1889 = vmatmul.f32.gmra.mxu0 %v1871
        %v1890 = vpop.f32.mrf.mxu0
        %v1891 = vadd.f32 0.0, %v1890
        %1892 = vdwg.mxu0
        %v1893 = vadd.f32 %v1835, %v1891
        %s1894 = scalar_lea.vmem %s13, 16
        %v1895 = vld [vmem:[%s1894] sm:$0xff]
        %v1896 = vld [vmem:[%s1894 + $0x8] sm:$0xff]
        %1899 = vrot.lane.b32.xlu0 %v1828, 127
        %v1900 = vpop.permute.xlu0 %1899
        %1901 = vrot.lane.b32.xlu0 %v1830, 127
        %v1902 = vpop.permute.xlu0 %1901
        %1905 = vxpose.xlu0.b32.start [1/16] %v1900, 128
        %1906 = vxpose.xlu0.b32.cont [2/16] %v1902, 128
        %1907 = vxpose.xlu0.b32.cont [3/16] 0.0, 128
        %1908 = vxpose.xlu0.b32.cont [4/16] 0.0, 128
        %1909 = vxpose.xlu0.b32.cont [5/16] 0.0, 128
        %1910 = vxpose.xlu0.b32.cont [6/16] 0.0, 128
        %1911 = vxpose.xlu0.b32.cont [7/16] 0.0, 128
        %1912 = vxpose.xlu0.b32.cont [8/16] 0.0, 128
        %1913 = vxpose.xlu0.b32.cont [9/16] 0.0, 128
        %1914 = vxpose.xlu0.b32.cont [10/16] 0.0, 128
        %1915 = vxpose.xlu0.b32.cont [11/16] 0.0, 128
        %1916 = vxpose.xlu0.b32.cont [12/16] 0.0, 128
        %1917 = vxpose.xlu0.b32.cont [13/16] 0.0, 128
        %1918 = vxpose.xlu0.b32.cont [14/16] 0.0, 128
        %1919 = vxpose.xlu0.b32.cont [15/16] 0.0, 128
        %1920 = vxpose.xlu0.b32.end [16/16] 0.0, 128
        %v1921 = vpop.trf.xlu0
        %v1922 = vpop.trf.xlu0
        %v1923 = vpop.trf.xlu0
        %v1924 = vpop.trf.xlu0
        %v1925 = vpop.trf.xlu0
        %v1926 = vpop.trf.xlu0
        %v1927 = vpop.trf.xlu0
        %v1928 = vpop.trf.xlu0
        %v1929 = vpop.trf.xlu0
        %v1930 = vpop.trf.xlu0
        %v1931 = vpop.trf.xlu0
        %v1932 = vpop.trf.xlu0
        %v1933 = vpop.trf.xlu0
        %v1934 = vpop.trf.xlu0
        %v1935 = vpop.trf.xlu0
        %v1936 = vpop.trf.xlu0
        %v1938 = vsel %vm788, %v1921, 0
        %1940 = vmatpush.msra.mxu0 0.0
        %1941 = vmatpush.msra.mxu0 0.0
        %1942 = vmatpush.msra.mxu0 0.0
        %1943 = vmatpush.msra.mxu0 0.0
        %1944 = vmatpush.msra.mxu0 0.0
        %1945 = vmatpush.msra.mxu0 0.0
        %1946 = vmatpush.msra.mxu0 0.0
        %1947 = vmatpush.msra.mxu0 0.0
        %1948 = vmatpush.msra.mxu0 0.0
        %1949 = vmatpush.msra.mxu0 0.0
        %1950 = vmatpush.msra.mxu0 0.0
        %1951 = vmatpush.msra.mxu0 0.0
        %1952 = vmatpush.msra.mxu0 0.0
        %1953 = vmatpush.msra.mxu0 0.0
        %1954 = vmatpush.msra.mxu0 %v1896
        %1955 = vmatpush.msra.mxu0 %v1895
        %1956 = vmatmul.f32.gmra.mxu0 %v1938
        %v1957 = vpop.f32.mrf.mxu0
        %v1958 = vadd.f32 0.0, %v1957
        %1959 = vdwg.mxu0
        %v1960 = vadd.f32 %v1893, %v1958
        %vm1961 = vcmask 16384
        %v1962 = vsel %vm1961, %v1960, -inf
        %1963 = vmax.xlane.f32.xlu0 %v1962
        %v1964 = vpop.xlane.xlu0 %1963
        %v1965 = vsub.f32 %v1960, %v1964
        %v1966 = vmul.f32 %v1965, 1.442695
        %v1967 = vpow.pop %v1966
        %v1968 = vsel %vm1961, %v1967, 0.0
        %1969 = vadd.xlane.f32.xlu0 %v1968
        %v1970 = vpop.xlane.xlu0 %1969
        %v1971 = vrcp.pop %v1970
        %v1972 = vmul.f32 %v1970, %v1971
        %v1973 = vsub.f32 1.0, %v1972
        %v1974 = vmul.f32 %v1971, %v1973
        %v1975 = vadd.f32 %v1971, %v1974
        %vm1976 = vweird.f32 %v1970
        %vm1977 = vweird.f32 %v1971
        %vm1978 = vmor %vm1976, %vm1977
        %v1979 = vsel %vm1978, %v1971, %v1975
        %v1980 = vand.u32 2147483647, %v1970
        %vm1981 = vcmp.eq.f32.partialorder %v1980, 8.507059e+37
        %v1982 = vand.u32 %v1970, 2147483648
        %v1983 = vor.u32 1.1754944e-38, %v1982
        %v1984 = vsel %vm1981, %v1983, %v1979
        %v1985 = vmul.f32 %v1967, %v1984
        %1986 = vst.msk [vmem:[%s527] sm:$0x1] %vm1961, %v1985
        %s1987 = sand.u32 %s364, 1
        %s1988 = scalar_lea.sflag [#allocation3], %s1987
        %s1989 = sand.u32 %s364, 1
        %s1990 = scalar_lea.vmem [#allocation2], %s1989
        %p1991 = scmp.lt.s32.totalorder %s31, 1
        %s1992 = scalar_select %p1991, %s31, 1
        %s1993 = smul.addr %s1992, 2
        %s1994 = smul.addr %s1993, 8
        %s1995 = scalar_lea.vmem %s16, %s1994
        // Predicated region
        $region81: #{_lambda_.1} parent=79 // pred_check
          %p1996 = pneg %p374
        $region82: #{_lambda_.1} parent=79 // pred_check_branch
          %1998 = sbr.rel (%p1996) target = $region84
        $region83: #{_lambda_.1} parent=79 // pred_region
          %2000 = vsyncadd %s1988, 0
          %s2001 = scalar_lea.hbm %s15, %s31
          %s2003 = sshll.u32 %s1990, 4
          %s2004 = int_to_ptr.vmem [resolvable:$true] %s2003
          %s2005 = sshll.u32 %s2001, 4
          %s2006 = int_to_ptr.hbm [resolvable:$true] %s2005
          %2008 = dma.vmem_to_hbm [thread:$0]  %s2004, 16, %s2006, %s1988
        $region84: #{_lambda_.1} parent=79 // pred_fallthru
          _
        // Predicated region
        $region85: #{_lambda_.1} parent=79 // pred_check
          %p2009 = pneg %p400
        $region86: #{_lambda_.1} parent=79 // pred_check_branch
          %2011 = sbr.rel (%p2009) target = $region88
        $region87: #{_lambda_.1} parent=79 // pred_region
          _
        $region88: #{_lambda_.1} parent=79 // pred_fallthru
          _
      $region80: #{_lambda_.1} parent=5 // pred_fallthru
        _
      %p2012 = scmp.le.s32.totalorder 2, %s26
      // Predicated region
      $region89: #{_lambda_.1} parent=5 // pred_check
        %p2013 = pneg %p2012
      $region90: #{_lambda_.1} parent=5 // pred_check_branch
        %2015 = sbr.rel (%p2013) target = $region92
      $region91: #{_lambda_.1} parent=5 // pred_region
        %s2016 = ssub.s32 %s26, 2
        // Predicated region
        $region93: #{_lambda_.1} parent=91 // pred_check
          %p2017 = pneg %p380
        $region94: #{_lambda_.1} parent=91 // pred_check_branch
          %2019 = sbr.rel (%p2017) target = $region96
        $region95: #{_lambda_.1} parent=91 // pred_region
          %s2020 = sand.u32 %s365, 1
          %s2021 = scalar_lea.sflag [#allocation3], %s2020
          %s2022 = sand.u32 %s365, 1
          %s2023 = scalar_lea.vmem [#allocation2], %s2022
          %2025 = dma.done %s2021, 16
        $region96: #{_lambda_.1} parent=91 // pred_fallthru
          _
        // Predicated region
        $region97: #{_lambda_.1} parent=91 // pred_check
          %p2026 = pneg %p406
        $region98: #{_lambda_.1} parent=91 // pred_check_branch
          %2028 = sbr.rel (%p2026) target = $region100
        $region99: #{_lambda_.1} parent=91 // pred_region
          %p2029 = scmp.lt.s32.totalorder %s32, 1
          %s2030 = scalar_select %p2029, %s32, 1
          %s2031 = smul.addr %s2030, 2
          %s2032 = smul.addr %s2031, 8
          %s2033 = scalar_lea.vmem %s16, %s2032
        $region100: #{_lambda_.1} parent=91 // pred_fallthru
          _
      $region92: #{_lambda_.1} parent=5 // pred_fallthru
        _
    $region6: #{_lambda_.1} parent=1 // loop_footer
      %s30 = sadd.s32 1, %s26
    $region7: #{_lambda_.1} parent=1 // loop_footer_branch
      %25 = sbr.rel target = $region3
    $region8: #{_lambda_.1} parent=1 // loop_exit
      _
    %2034 = vsyncpa [#allocation3], 1
    %s2035 = scalar_lea.sflag [#allocation3], 1
    %2036 = vsyncpa %s2035, 1

</llo_original>
